<compile_context>
chip_gen: v7x
topology: tpu7x:2x2x1
jax: 0.10.0
libtpu: 0.0.40
codegen_flags: <defaults>
</compile_context>

<pallas_src>
import jax
import jax.numpy as jnp
from jax.experimental import pallas as pl
from jax.experimental.pallas import tpu as pltpu


def _pick_tile(n: int, preferred=(128, 64, 32, 16, 8)) -> int:
    """Largest preferred tile that divides n; falls back to full extent."""
    for t in preferred:
        if n >= t and n % t == 0:
            return t
    return n


# ------------------------- fused QKV + attention kernel ----------------------

def _make_fused_kernel(scale: float, tq: int):
    def kernel(x_ref, xt_ref, wq_ref, wkt_ref, wv_ref, o_ref):
        # x_ref holds the FULL (seq, dim_in) activation (constant index_map);
        # slice this program's query rows out of the resident copy.
        row = pl.multiple_of(pl.program_id(0) * tq, tq)
        x_tile = x_ref[pl.ds(row, tq), :]

        # Q tile projection, softmax scale folded in here (tq x d, hides under MXU).
        q = jnp.dot(x_tile, wq_ref[...],
                    preferred_element_type=jnp.float32) * scale          # (tq, d)

        # K^T produced directly (Wk^T @ x^T) -> plain matmul, no XLU transpose.
        kt = jnp.dot(wkt_ref[...], xt_ref[...],
                     preferred_element_type=jnp.float32)                  # (d, seq)

        # V projection from the resident activation.
        v = jnp.dot(x_ref[...], wv_ref[...],
                    preferred_element_type=jnp.float32)                   # (seq, d)

        # Scores for this q tile against the full key range.
        s = jnp.dot(q, kt, preferred_element_type=jnp.float32)            # (tq, seq)

        # Single-pass numerically-stable softmax (K/V fully resident).
        m = jnp.max(s, axis=-1, keepdims=True)
        p = jnp.exp(s - m)
        denom = jnp.sum(p, axis=-1, keepdims=True)

        acc = jnp.dot(p, v, preferred_element_type=jnp.float32)           # (tq, d)
        # Normalize the small (tq, d) accumulator once; exact divide is ~free here.
        o_ref[...] = (acc / denom).astype(o_ref.dtype)

    return kernel


def self_attention(x, wq, wk, wv):
    """x: (seq, dim_in); wq/wk/wv: (dim_in, dim_out). Returns (seq, dim_out)."""
    seq, dim_in = x.shape
    dim_out = wq.shape[1]
    scale = 1.0 / (float(dim_out) ** 0.5)

    # Prepared once, outside the kernel: x^T and Wk^T so K^T is a plain matmul.
    x_t = x.T                      # (dim_in, seq)
    wk_t = wk.T                    # (dim_out, dim_in)

    tq = _pick_tile(seq)
    nq = seq // tq
    itemsize = jnp.dtype(x.dtype).itemsize

    cost = pl.CostEstimate(
        # Q proj once + K/V proj recomputed per q tile + scores + P@V.
        flops=(2 * seq * dim_in * dim_out * (1 + 2 * nq)
               + 2 * 2 * seq * seq * dim_out),
        transcendentals=seq * seq,
        bytes_accessed=(2 * seq * dim_in + 3 * dim_in * dim_out
                        + seq * dim_out) * itemsize,
    )

    return pl.pallas_call(
        _make_fused_kernel(scale, tq),
        out_shape=jax.ShapeDtypeStruct((seq, dim_out), x.dtype),
        grid_spec=pltpu.PrefetchScalarGridSpec(
            num_scalar_prefetch=0,
            grid=(nq,),
            in_specs=[
                pl.BlockSpec((seq, dim_in), lambda i: (0, 0)),      # x (resident)
                pl.BlockSpec((dim_in, seq), lambda i: (0, 0)),      # x^T (resident)
                pl.BlockSpec((dim_in, dim_out), lambda i: (0, 0)),  # Wq
                pl.BlockSpec((dim_out, dim_in), lambda i: (0, 0)),  # Wk^T
                pl.BlockSpec((dim_in, dim_out), lambda i: (0, 0)),  # Wv
            ],
            out_specs=pl.BlockSpec((tq, dim_out), lambda i: (i, 0)),
        ),
        compiler_params=pltpu.CompilerParams(
            dimension_semantics=("parallel",)),
        cost_estimate=cost,
    )(x, x_t, wq, wk_t, wv)


# ---------------------------------- reference ---------------------------------

def _reference(x, wq, wk, wv):
    q = x @ wq
    k = x @ wk
    v = x @ wv
    scores = (q @ k.T) / jnp.sqrt(jnp.float32(wq.shape[1]))
    return jax.nn.softmax(scores, axis=-1) @ v


if __name__ == "__main__":
    # Lane-dense, tile-friendly small shapes: seq=512, dim_in=dim_out=128.
    seq, dim_in, dim_out = 512, 128, 128

    key = jax.random.PRNGKey(0)
    kx, kq, kk, kv = jax.random.split(key, 4)

    x = jax.random.normal(kx, (seq, dim_in), dtype=jnp.float32)
    # nn.Linear(dim_in, dim_out) stores weight as (dim_out, dim_in); we keep
    # the transposed (dim_in, dim_out) layout so y = x @ W matches x @ W_pt.T.
    bound = 1.0 / (dim_in ** 0.5)
    wq = jax.random.uniform(kq, (dim_in, dim_out), jnp.float32, -bound, bound)
    wk = jax.random.uniform(kk, (dim_in, dim_out), jnp.float32, -bound, bound)
    wv = jax.random.uniform(kv, (dim_in, dim_out), jnp.float32, -bound, bound)

    out = jax.block_until_ready(self_attention(x, wq, wk, wv))

    ref = _reference(x, wq, wk, wv)
    assert out.shape == (seq, dim_out)
    assert jnp.allclose(out, ref, atol=2e-3, rtol=2e-3), "mismatch vs reference"

    print("KERNEL_OK")
</pallas_src>

<mosaic_0001>
module attributes {stable_mosaic.version = 11 : i64} {
  func.func @kernel(%arg0: i32, %arg1: memref<512x128xf32, #tpu.memory_space<vmem>>, %arg2: memref<128x512xf32, #tpu.memory_space<vmem>>, %arg3: memref<128x128xf32, #tpu.memory_space<vmem>>, %arg4: memref<128x128xf32, #tpu.memory_space<vmem>>, %arg5: memref<128x128xf32, #tpu.memory_space<vmem>>, %arg6: memref<128x128xf32, #tpu.memory_space<vmem>>) attributes {dimension_semantics = [#tpu.dimension_semantics<parallel>], iteration_bounds = array<i64: 4>, scalar_prefetch = 0 : i64, scratch_operands = 0 : i64, tpu.core_type = #tpu.core_type<tc>, window_params = [{pipeline_mode = #tpu.pipeline_mode<synchronous>, transform_indices = @transform_0, window_bounds = array<i64: 512, 128>}, {pipeline_mode = #tpu.pipeline_mode<synchronous>, transform_indices = @transform_1, window_bounds = array<i64: 128, 512>}, {pipeline_mode = #tpu.pipeline_mode<synchronous>, transform_indices = @transform_2, window_bounds = array<i64: 128, 128>}, {pipeline_mode = #tpu.pipeline_mode<synchronous>, transform_indices = @transform_3, window_bounds = array<i64: 128, 128>}, {pipeline_mode = #tpu.pipeline_mode<synchronous>, transform_indices = @transform_4, window_bounds = array<i64: 128, 128>}, {transform_indices = @transform_5, window_bounds = array<i64: 128, 128>}]} {
    %c128_i32 = arith.constant 128 : i32
    %0 = arith.muli %arg0, %c128_i32 : i32
    %1 = tpu.assume_multiple %0, 128 : i32
    %2 = arith.index_cast %1 : i32 to index
    %c0 = arith.constant 0 : index
    %3 = vector.load %arg1[%2, %c0] : memref<512x128xf32, #tpu.memory_space<vmem>>, vector<128x128xf32>
    %c0_0 = arith.constant 0 : index
    %c0_1 = arith.constant 0 : index
    %4 = vector.load %arg3[%c0_0, %c0_1] : memref<128x128xf32, #tpu.memory_space<vmem>>, vector<128x128xf32>
    %cst = arith.constant dense<0.000000e+00> : vector<128x128xf32>
    %5 = tpu.matmul %3, %4, %cst {dimension_numbers = #tpu.dot_dimension_numbers<[1], [0], [0], [1], [0, 0, 1, 1], [], []>} : vector<128x128xf32>, vector<128x128xf32>, vector<128x128xf32> -> vector<128x128xf32>
    %cst_2 = arith.constant 0.0883883461 : f32
    %6 = vector.broadcast %cst_2 : f32 to vector<128x128xf32>
    %7 = arith.mulf %5, %6 : vector<128x128xf32>
    %c0_3 = arith.constant 0 : index
    %c0_4 = arith.constant 0 : index
    %8 = vector.load %arg4[%c0_3, %c0_4] : memref<128x128xf32, #tpu.memory_space<vmem>>, vector<128x128xf32>
    %c0_5 = arith.constant 0 : index
    %c0_6 = arith.constant 0 : index
    %9 = vector.load %arg2[%c0_5, %c0_6] : memref<128x512xf32, #tpu.memory_space<vmem>>, vector<128x512xf32>
    %cst_7 = arith.constant dense<0.000000e+00> : vector<128x512xf32>
    %10 = tpu.matmul %8, %9, %cst_7 {dimension_numbers = #tpu.dot_dimension_numbers<[1], [0], [0], [1], [0, 0, 1, 1], [], []>} : vector<128x128xf32>, vector<128x512xf32>, vector<128x512xf32> -> vector<128x512xf32>
    %c0_8 = arith.constant 0 : index
    %c0_9 = arith.constant 0 : index
    %11 = vector.load %arg1[%c0_8, %c0_9] : memref<512x128xf32, #tpu.memory_space<vmem>>, vector<512x128xf32>
    %c0_10 = arith.constant 0 : index
    %c0_11 = arith.constant 0 : index
    %12 = vector.load %arg5[%c0_10, %c0_11] : memref<128x128xf32, #tpu.memory_space<vmem>>, vector<128x128xf32>
    %cst_12 = arith.constant dense<0.000000e+00> : vector<512x128xf32>
    %13 = tpu.matmul %11, %12, %cst_12 {dimension_numbers = #tpu.dot_dimension_numbers<[1], [0], [0], [1], [0, 0, 1, 1], [], []>} : vector<512x128xf32>, vector<128x128xf32>, vector<512x128xf32> -> vector<512x128xf32>
    %cst_13 = arith.constant dense<0.000000e+00> : vector<128x512xf32>
    %14 = tpu.matmul %7, %10, %cst_13 {dimension_numbers = #tpu.dot_dimension_numbers<[1], [0], [0], [1], [0, 0, 1, 1], [], []>} : vector<128x128xf32>, vector<128x512xf32>, vector<128x512xf32> -> vector<128x512xf32>
    %cst_14 = arith.constant dense<0xFF800000> : vector<128xf32>
    %15 = vector.multi_reduction <maximumf>, %14, %cst_14 [1] : vector<128x512xf32> to vector<128xf32>
    %16 = vector.shape_cast %15 : vector<128xf32> to vector<128x1xf32>
    %17 = vector.broadcast %16 : vector<128x1xf32> to vector<128x512xf32>
    %18 = arith.subf %14, %17 : vector<128x512xf32>
    %19 = math.exp %18 : vector<128x512xf32>
    %cst_15 = arith.constant dense<0.000000e+00> : vector<128xf32>
    %20 = vector.multi_reduction <add>, %19, %cst_15 [1] : vector<128x512xf32> to vector<128xf32>
    %21 = vector.shape_cast %20 : vector<128xf32> to vector<128x1xf32>
    %cst_16 = arith.constant dense<0.000000e+00> : vector<128x128xf32>
    %22 = tpu.matmul %19, %13, %cst_16 {dimension_numbers = #tpu.dot_dimension_numbers<[1], [0], [0], [1], [0, 0, 1, 1], [], []>} : vector<128x512xf32>, vector<512x128xf32>, vector<128x128xf32> -> vector<128x128xf32>
    %23 = vector.broadcast %21 : vector<128x1xf32> to vector<128x128xf32>
    %24 = arith.divf %22, %23 : vector<128x128xf32>
    %c0_17 = arith.constant 0 : index
    %c0_18 = arith.constant 0 : index
    %25 = vector.load %arg6[%c0_17, %c0_18] : memref<128x128xf32, #tpu.memory_space<vmem>>, vector<128x128xf32>
    tpu.vector_store %arg6[%c0_17, %c0_18], %24 {strides = array<i32>} : memref<128x128xf32, #tpu.memory_space<vmem>>, vector<128x128xf32>,
    return
  }
  func.func @transform_0(%arg0: i32) -> (i32, i32) {
    %c0_i32 = arith.constant 0 : i32
    %c0_i32_0 = arith.constant 0 : i32
    %c0_i32_1 = arith.constant 0 : i32
    return %c0_i32, %c0_i32_0 : i32, i32
  }
  func.func @transform_1(%arg0: i32) -> (i32, i32) {
    %c0_i32 = arith.constant 0 : i32
    %c0_i32_0 = arith.constant 0 : i32
    %c0_i32_1 = arith.constant 0 : i32
    return %c0_i32, %c0_i32_0 : i32, i32
  }
  func.func @transform_2(%arg0: i32) -> (i32, i32) {
    %c0_i32 = arith.constant 0 : i32
    %c0_i32_0 = arith.constant 0 : i32
    %c0_i32_1 = arith.constant 0 : i32
    return %c0_i32, %c0_i32_0 : i32, i32
  }
  func.func @transform_3(%arg0: i32) -> (i32, i32) {
    %c0_i32 = arith.constant 0 : i32
    %c0_i32_0 = arith.constant 0 : i32
    %c0_i32_1 = arith.constant 0 : i32
    return %c0_i32, %c0_i32_0 : i32, i32
  }
  func.func @transform_4(%arg0: i32) -> (i32, i32) {
    %c0_i32 = arith.constant 0 : i32
    %c0_i32_0 = arith.constant 0 : i32
    %c0_i32_1 = arith.constant 0 : i32
    return %c0_i32, %c0_i32_0 : i32, i32
  }
  func.func @transform_5(%arg0: i32) -> (i32, i32) {
    %c0_i32 = arith.constant 0 : i32
    %c0_i32_0 = arith.constant 0 : i32
    return %arg0, %c0_i32 : i32, i32
  }
}

</mosaic_0001>

<llo_original>
// kernel: tpu_custom_call.1
$region0: #{tpu_custom_call.1}
  #allocation0 [shape = 'u32[]', space=smem, size = 0x4, offset = 0x4, fixed_abs, tag = 'smem constant byte address 0x4 - core index']
  #allocation1 [shape = 'u32[144,128]{1,0:T(1,128)}', space=vmem, size = 0x12000, scoped, tag = 'internal scratch']
  %s0 = inlined_call_operand.hbm [shape: f32[512,128], index: 0, kind: input, shape index: {}]
  %s1 = inlined_call_operand.hbm [shape: f32[128,512], index: 1, kind: input, shape index: {}]
  %s2 = inlined_call_operand.hbm [shape: f32[128,128], index: 2, kind: input, shape index: {}]
  %s3 = inlined_call_operand.hbm [shape: f32[128,128], index: 3, kind: input, shape index: {}]
  %s4 = inlined_call_operand.hbm [shape: f32[128,128], index: 4, kind: input, shape index: {}]
  %s5 = inlined_call_operand.hbm [shape: f32[512,128], index: 5, kind: output, shape index: {}]
  %s6 = sld [smem:[#allocation0]]
  $region73: #{tpu_custom_call.1} parent=0
    _
  %s8 = ssub.s32 1, %s6
  %s9 = scalar_select 0, %s8, %s6
  $region1: #{tpu_custom_call.1} parent=0
    #allocation2 [shape = 'u8[262144]{0}', space=vmem, size = 0x40000, scoped, tag = 'input window, operand 0, single buffered']
    #allocation3 [shape = 's32[2]{0}', space=sflag, size = 0x8, scoped, tag = 'scoped memory for tpu_custom_call.1']
    #allocation4 [shape = 's32[2]{0}', space=sflag, size = 0x8, scoped, tag = 'scoped memory for tpu_custom_call.1']
    #allocation5 [shape = 'u8[262144]{0}', space=vmem, size = 0x40000, scoped, tag = 'input window, operand 1, single buffered']
    #allocation6 [shape = 's32[1]{0}', space=sflag, size = 0x4, scoped, tag = 'scoped memory for tpu_custom_call.1']
    #allocation7 [shape = 'u8[65536]{0}', space=vmem, size = 0x10000, scoped, tag = 'input window, operand 2, single buffered']
    #allocation8 [shape = 'u8[65536]{0}', space=vmem, size = 0x10000, scoped, tag = 'input window, operand 3, single buffered']
    #allocation9 [shape = 's32[1]{0}', space=sflag, size = 0x4, scoped, tag = 'scoped memory for tpu_custom_call.1']
    #allocation10 [shape = 'u8[65536]{0}', space=vmem, size = 0x10000, scoped, tag = 'input window, operand 4, single buffered']
    #allocation11 [shape = 'u8[131072]{0}', space=vmem, size = 0x20000, scoped, tag = 'output window, operand 0']
    %10 = vsyncpa [#allocation3], 0
    %11 = vsyncpa [#allocation6], 0
    %12 = vsyncpa [#allocation9], 0
    %13 = vsyncpa [#allocation4], 0
    %s14 = scalar_lea.sflag [#allocation4], 1
    %15 = vsyncpa %s14, 0
    loop: start=0, step=1, limit=6
    $region2: #{tpu_custom_call.1} parent=1 // loop_pre_header
      _
    $region3: #{tpu_custom_call.1} parent=1 // loop_header
      %s17 = sphi 0, %s21
      %p18 = scmp.ge.s32.totalorder %s17, 6
      %s25 = sphi 0, %s25
      %s27 = sphi 0, %s25
      %s28 = sphi 0, %s27
      %s42 = sphi 0, %s28
      %s46 = sphi 0, %s46
      %s48 = sphi 0, %s46
      %s49 = sphi 0, %s48
      %s63 = sphi 0, %s49
      %s67 = sphi 0, %s67
      %s69 = sphi 0, %s67
      %s70 = sphi 0, %s69
      %s84 = sphi 0, %s70
      %s88 = sphi 0, %s88
      %s90 = sphi 0, %s88
      %s91 = sphi 0, %s90
      %s105 = sphi 0, %s91
      %s109 = sphi 0, %s109
      %s111 = sphi 0, %s109
      %s112 = sphi 0, %s111
      %s126 = sphi 0, %s112
      %s132 = sphi 0, %s134
      %s135 = sphi 0, %s132
      %s136 = sphi 0, %s135
      %s152 = sphi 0, %s136
    $region4: #{tpu_custom_call.1} parent=1 // loop_header_branch
      %20 = sbr.rel (%p18) target = $region8
    $region5: #{tpu_custom_call.1} parent=1 // loop_body
      %s22 = ssub.s32 %s17, 1
      %s23 = ssub.s32 %s17, 2
      %s24 = sadd.s32 %s17, 1
      %s26 = sadd.s32 %s25, 1
      %p29 = scmp.eq.s32.totalorder %s17, 3
      %p30 = scmp.ne.s32.totalorder %s25, %s27
      %p31 = scmp.eq.s32.totalorder %s17, 0
      %p32 = por %p30, %p31
      %p33 = scmp.ne.s32.totalorder %s25, %s27
      %p34 = scmp.eq.s32.totalorder %s22, 3
      %p35 = por %p33, %p34
      %p36 = scmp.ne.s32.totalorder %s27, %s28
      %p37 = scmp.eq.s32.totalorder %s22, 0
      %p38 = por %p36, %p37
      %p39 = scmp.ne.s32.totalorder %s27, %s28
      %p40 = scmp.eq.s32.totalorder %s23, 3
      %p41 = por %p39, %p40
      %p43 = scmp.ne.s32.totalorder %s28, %s42
      %p44 = scmp.eq.s32.totalorder %s23, 0
      %p45 = por %p43, %p44
      %s47 = sadd.s32 %s46, 1
      %p50 = scmp.eq.s32.totalorder %s17, 3
      %p51 = scmp.ne.s32.totalorder %s46, %s48
      %p52 = scmp.eq.s32.totalorder %s17, 0
      %p53 = por %p51, %p52
      %p54 = scmp.ne.s32.totalorder %s46, %s48
      %p55 = scmp.eq.s32.totalorder %s22, 3
      %p56 = por %p54, %p55
      %p57 = scmp.ne.s32.totalorder %s48, %s49
      %p58 = scmp.eq.s32.totalorder %s22, 0
      %p59 = por %p57, %p58
      %p60 = scmp.ne.s32.totalorder %s48, %s49
      %p61 = scmp.eq.s32.totalorder %s23, 3
      %p62 = por %p60, %p61
      %p64 = scmp.ne.s32.totalorder %s49, %s63
      %p65 = scmp.eq.s32.totalorder %s23, 0
      %p66 = por %p64, %p65
      %s68 = sadd.s32 %s67, 1
      %p71 = scmp.eq.s32.totalorder %s17, 3
      %p72 = scmp.ne.s32.totalorder %s67, %s69
      %p73 = scmp.eq.s32.totalorder %s17, 0
      %p74 = por %p72, %p73
      %p75 = scmp.ne.s32.totalorder %s67, %s69
      %p76 = scmp.eq.s32.totalorder %s22, 3
      %p77 = por %p75, %p76
      %p78 = scmp.ne.s32.totalorder %s69, %s70
      %p79 = scmp.eq.s32.totalorder %s22, 0
      %p80 = por %p78, %p79
      %p81 = scmp.ne.s32.totalorder %s69, %s70
      %p82 = scmp.eq.s32.totalorder %s23, 3
      %p83 = por %p81, %p82
      %p85 = scmp.ne.s32.totalorder %s70, %s84
      %p86 = scmp.eq.s32.totalorder %s23, 0
      %p87 = por %p85, %p86
      %s89 = sadd.s32 %s88, 1
      %p92 = scmp.eq.s32.totalorder %s17, 3
      %p93 = scmp.ne.s32.totalorder %s88, %s90
      %p94 = scmp.eq.s32.totalorder %s17, 0
      %p95 = por %p93, %p94
      %p96 = scmp.ne.s32.totalorder %s88, %s90
      %p97 = scmp.eq.s32.totalorder %s22, 3
      %p98 = por %p96, %p97
      %p99 = scmp.ne.s32.totalorder %s90, %s91
      %p100 = scmp.eq.s32.totalorder %s22, 0
      %p101 = por %p99, %p100
      %p102 = scmp.ne.s32.totalorder %s90, %s91
      %p103 = scmp.eq.s32.totalorder %s23, 3
      %p104 = por %p102, %p103
      %p106 = scmp.ne.s32.totalorder %s91, %s105
      %p107 = scmp.eq.s32.totalorder %s23, 0
      %p108 = por %p106, %p107
      %s110 = sadd.s32 %s109, 1
      %p113 = scmp.eq.s32.totalorder %s17, 3
      %p114 = scmp.ne.s32.totalorder %s109, %s111
      %p115 = scmp.eq.s32.totalorder %s17, 0
      %p116 = por %p114, %p115
      %p117 = scmp.ne.s32.totalorder %s109, %s111
      %p118 = scmp.eq.s32.totalorder %s22, 3
      %p119 = por %p117, %p118
      %p120 = scmp.ne.s32.totalorder %s111, %s112
      %p121 = scmp.eq.s32.totalorder %s22, 0
      %p122 = por %p120, %p121
      %p123 = scmp.ne.s32.totalorder %s111, %s112
      %p124 = scmp.eq.s32.totalorder %s23, 3
      %p125 = por %p123, %p124
      %p127 = scmp.ne.s32.totalorder %s112, %s126
      %p128 = scmp.eq.s32.totalorder %s23, 0
      %p129 = por %p127, %p128
      %s130 = ssub.s32 %s17, %s24
      %p131 = scmp.eq.s32.totalorder %s130, 0
      %s133 = sadd.s32 %s132, 1
      %s134 = scalar_select %p131, %s132, %s133
      %p137 = pneg %p131
      %p138 = scmp.eq.s32.totalorder %s17, 3
      %p139 = por %p137, %p138
      %p140 = scmp.ne.s32.totalorder %s132, %s135
      %p141 = scmp.eq.s32.totalorder %s17, 0
      %p142 = por %p140, %p141
      %p143 = scmp.ne.s32.totalorder %s132, %s135
      %p144 = scmp.eq.s32.totalorder %s22, 3
      %p145 = por %p143, %p144
      %p146 = scmp.ne.s32.totalorder %s135, %s136
      %p147 = scmp.eq.s32.totalorder %s22, 0
      %p148 = por %p146, %p147
      %p149 = scmp.ne.s32.totalorder %s135, %s136
      %p150 = scmp.eq.s32.totalorder %s23, 3
      %p151 = por %p149, %p150
      %p153 = scmp.ne.s32.totalorder %s136, %s152
      %p154 = scmp.eq.s32.totalorder %s23, 0
      %p155 = por %p153, %p154
      %p156 = scmp.le.s32.totalorder 1, %s17
      %p157 = scmp.lt.s32.totalorder %s17, 5
      %p158 = pnand %p156, %p157
      %p159 = pneg %p158
      // Predicated region
      $region9: #{tpu_custom_call.1} parent=5 // pred_check
        _
      $region10: #{tpu_custom_call.1} parent=5 // pred_check_branch
        %161 = sbr.rel (%p158) target = $region12
      $region11: #{tpu_custom_call.1} parent=5 // pred_region
        %s162 = ssub.s32 %s17, 1
        // Predicated region
        $region13: #{tpu_custom_call.1} parent=11 // pred_check
          %p163 = pneg %p38
        $region14: #{tpu_custom_call.1} parent=11 // pred_check_branch
          %165 = sbr.rel (%p163) target = $region16
        $region15: #{tpu_custom_call.1} parent=11 // pred_region
          %s167 = ssub.s32 8192, 8192
          %168 = vsyncadd [#allocation3], %s167
          %s169 = sshll.u32 [#allocation2], 4
          %s170 = int_to_ptr.vmem [resolvable:$true] %s169
          %175 = dma.hbm_to_vmem [thread:$0]  %s0, 8192, %s170, [#allocation3], 128, 128, 8
        $region16: #{tpu_custom_call.1} parent=11 // pred_fallthru
          _
        // Predicated region
        $region17: #{tpu_custom_call.1} parent=11 // pred_check
          %p176 = pneg %p59
        $region18: #{tpu_custom_call.1} parent=11 // pred_check_branch
          %178 = sbr.rel (%p176) target = $region20
        $region19: #{tpu_custom_call.1} parent=11 // pred_region
          %s180 = ssub.s32 8192, 8192
          %181 = vsyncadd [#allocation6], %s180
          %s182 = sshll.u32 [#allocation5], 4
          %s183 = int_to_ptr.vmem [resolvable:$true] %s182
          %188 = dma.hbm_to_vmem [thread:$0]  %s1, 8192, %s183, [#allocation6], 512, 512, 32
        $region20: #{tpu_custom_call.1} parent=11 // pred_fallthru
          _
        // Predicated region
        $region21: #{tpu_custom_call.1} parent=11 // pred_check
          %p189 = pneg %p80
        $region22: #{tpu_custom_call.1} parent=11 // pred_check_branch
          %191 = sbr.rel (%p189) target = $region24
        $region23: #{tpu_custom_call.1} parent=11 // pred_region
          %s193 = ssub.s32 2048, 2048
          %194 = vsyncadd [#allocation6], %s193
          %s195 = sshll.u32 [#allocation7], 4
          %s196 = int_to_ptr.vmem [resolvable:$true] %s195
          %201 = dma.hbm_to_vmem [thread:$0]  %s2, 2048, %s196, [#allocation6], 128, 128, 8
        $region24: #{tpu_custom_call.1} parent=11 // pred_fallthru
          _
        // Predicated region
        $region25: #{tpu_custom_call.1} parent=11 // pred_check
          %p202 = pneg %p101
        $region26: #{tpu_custom_call.1} parent=11 // pred_check_branch
          %204 = sbr.rel (%p202) target = $region28
        $region27: #{tpu_custom_call.1} parent=11 // pred_region
          %s206 = ssub.s32 2048, 2048
          %207 = vsyncadd [#allocation9], %s206
          %s208 = sshll.u32 [#allocation8], 4
          %s209 = int_to_ptr.vmem [resolvable:$true] %s208
          %214 = dma.hbm_to_vmem [thread:$0]  %s3, 2048, %s209, [#allocation9], 128, 128, 8
        $region28: #{tpu_custom_call.1} parent=11 // pred_fallthru
          _
        // Predicated region
        $region29: #{tpu_custom_call.1} parent=11 // pred_check
          %p215 = pneg %p122
        $region30: #{tpu_custom_call.1} parent=11 // pred_check_branch
          %217 = sbr.rel (%p215) target = $region32
        $region31: #{tpu_custom_call.1} parent=11 // pred_region
          %s219 = ssub.s32 2048, 2048
          %220 = vsyncadd [#allocation9], %s219
          %s221 = sshll.u32 [#allocation10], 4
          %s222 = int_to_ptr.vmem [resolvable:$true] %s221
          %227 = dma.hbm_to_vmem [thread:$0]  %s4, 2048, %s222, [#allocation9], 128, 128, 8
        $region32: #{tpu_custom_call.1} parent=11 // pred_fallthru
          _
      $region12: #{tpu_custom_call.1} parent=5 // pred_fallthru
        _
      %p228 = scmp.lt.s32.totalorder %s17, 4
      // Predicated region
      $region33: #{tpu_custom_call.1} parent=5 // pred_check
        %p229 = pneg %p228
      $region34: #{tpu_custom_call.1} parent=5 // pred_check_branch
        %231 = sbr.rel (%p229) target = $region36
      $region35: #{tpu_custom_call.1} parent=5 // pred_region
        _
      $region36: #{tpu_custom_call.1} parent=5 // pred_fallthru
        _
      %p232 = scmp.le.s32.totalorder 1, %s17
      %p233 = scmp.lt.s32.totalorder %s17, 5
      %p234 = pnand %p232, %p233
      %p235 = pneg %p234
      // Predicated region
      $region37: #{tpu_custom_call.1} parent=5 // pred_check
        _
      $region38: #{tpu_custom_call.1} parent=5 // pred_check_branch
        %237 = sbr.rel (%p234) target = $region40
      $region39: #{tpu_custom_call.1} parent=5 // pred_region
        %s238 = ssub.s32 %s17, 1
        // Predicated region
        $region41: #{tpu_custom_call.1} parent=39 // pred_check
          %p239 = pneg %p38
        $region42: #{tpu_custom_call.1} parent=39 // pred_check_branch
          %241 = sbr.rel (%p239) target = $region44
        $region43: #{tpu_custom_call.1} parent=39 // pred_region
          %242 = dma.done [#allocation3], 8192
        $region44: #{tpu_custom_call.1} parent=39 // pred_fallthru
          _
        // Predicated region
        $region45: #{tpu_custom_call.1} parent=39 // pred_check
          %p243 = pneg %p59
        $region46: #{tpu_custom_call.1} parent=39 // pred_check_branch
          %245 = sbr.rel (%p243) target = $region48
        $region47: #{tpu_custom_call.1} parent=39 // pred_region
          %246 = dma.done [#allocation6], 8192
        $region48: #{tpu_custom_call.1} parent=39 // pred_fallthru
          _
        // Predicated region
        $region49: #{tpu_custom_call.1} parent=39 // pred_check
          %p247 = pneg %p80
        $region50: #{tpu_custom_call.1} parent=39 // pred_check_branch
          %249 = sbr.rel (%p247) target = $region52
        $region51: #{tpu_custom_call.1} parent=39 // pred_region
          %250 = dma.done [#allocation6], 2048
        $region52: #{tpu_custom_call.1} parent=39 // pred_fallthru
          _
        // Predicated region
        $region53: #{tpu_custom_call.1} parent=39 // pred_check
          %p251 = pneg %p101
        $region54: #{tpu_custom_call.1} parent=39 // pred_check_branch
          %253 = sbr.rel (%p251) target = $region56
        $region55: #{tpu_custom_call.1} parent=39 // pred_region
          %254 = dma.done [#allocation9], 2048
        $region56: #{tpu_custom_call.1} parent=39 // pred_fallthru
          _
        // Predicated region
        $region57: #{tpu_custom_call.1} parent=39 // pred_check
          %p255 = pneg %p122
        $region58: #{tpu_custom_call.1} parent=39 // pred_check_branch
          %257 = sbr.rel (%p255) target = $region60
        $region59: #{tpu_custom_call.1} parent=39 // pred_region
          %258 = dma.done [#allocation9], 2048
        $region60: #{tpu_custom_call.1} parent=39 // pred_fallthru
          _
        %p259 = pneg %p38
        %p260 = pneg %p35
        %p261 = pneg %p59
        %p262 = pneg %p56
        %p263 = pneg %p80
        %p264 = pneg %p77
        %p265 = pneg %p101
        %p266 = pneg %p98
        %p267 = pneg %p122
        %p268 = pneg %p119
        %p269 = pneg %p148
        %p270 = pneg %p145
        %s271 = sand.u32 %s135, 1
        %s272 = scalar_lea.sflag [#allocation4], %s271
        %s273 = sand.u32 %s135, 1
        %s274 = smul.addr %s273, 128
        %s275 = scalar_lea.vmem [#allocation11], %s274
        %s276 = smul.u32 16, %s22
        %s277 = smul.u32 %s22, 128
        %s278 = scalar_lea.vmem [#allocation2], %s277
        %v279 = vld [vmem:[%s278] sm:$0xff]
        %v280 = vld [vmem:[%s278 + $0x8] sm:$0xff]
        %v281 = vld [vmem:[%s278 + $0x10] sm:$0xff]
        %v282 = vld [vmem:[%s278 + $0x18] sm:$0xff]
        %v283 = vld [vmem:[%s278 + $0x20] sm:$0xff]
        %v284 = vld [vmem:[%s278 + $0x28] sm:$0xff]
        %v285 = vld [vmem:[%s278 + $0x30] sm:$0xff]
        %v286 = vld [vmem:[%s278 + $0x38] sm:$0xff]
        %v287 = vld [vmem:[%s278 + $0x40] sm:$0xff]
        %v288 = vld [vmem:[%s278 + $0x48] sm:$0xff]
        %v289 = vld [vmem:[%s278 + $0x50] sm:$0xff]
        %v290 = vld [vmem:[%s278 + $0x58] sm:$0xff]
        %v291 = vld [vmem:[%s278 + $0x60] sm:$0xff]
        %v292 = vld [vmem:[%s278 + $0x68] sm:$0xff]
        %v293 = vld [vmem:[%s278 + $0x70] sm:$0xff]
        %v294 = vld [vmem:[%s278 + $0x78] sm:$0xff]
        %v295 = vld [vmem:[#allocation7] sm:$0xff]
        %v296 = vld [vmem:[#allocation7 + $0x8] sm:$0xff]
        %v297 = vld [vmem:[#allocation7 + $0x10] sm:$0xff]
        %v298 = vld [vmem:[#allocation7 + $0x18] sm:$0xff]
        %v299 = vld [vmem:[#allocation7 + $0x20] sm:$0xff]
        %v300 = vld [vmem:[#allocation7 + $0x28] sm:$0xff]
        %v301 = vld [vmem:[#allocation7 + $0x30] sm:$0xff]
        %v302 = vld [vmem:[#allocation7 + $0x38] sm:$0xff]
        %v303 = vld [vmem:[#allocation7 + $0x40] sm:$0xff]
        %v304 = vld [vmem:[#allocation7 + $0x48] sm:$0xff]
        %v305 = vld [vmem:[#allocation7 + $0x50] sm:$0xff]
        %v306 = vld [vmem:[#allocation7 + $0x58] sm:$0xff]
        %v307 = vld [vmem:[#allocation7 + $0x60] sm:$0xff]
        %v308 = vld [vmem:[#allocation7 + $0x68] sm:$0xff]
        %v309 = vld [vmem:[#allocation7 + $0x70] sm:$0xff]
        %v310 = vld [vmem:[#allocation7 + $0x78] sm:$0xff]
        %311 = vmatprep.subr.mxu0 0.0
        %312 = vmatpush1.msra.mxu0 %v295
        %313 = vmatprep.subr.mxu0 0.0
        %314 = vmatpush1.msra.mxu0 %v296
        %315 = vmatprep.subr.mxu0 0.0
        %316 = vmatpush1.msra.mxu0 %v297
        %317 = vmatprep.subr.mxu0 0.0
        %318 = vmatpush1.msra.mxu0 %v298
        %319 = vmatprep.subr.mxu0 0.0
        %320 = vmatpush1.msra.mxu0 %v299
        %321 = vmatprep.subr.mxu0 0.0
        %322 = vmatpush1.msra.mxu0 %v300
        %323 = vmatprep.subr.mxu0 0.0
        %324 = vmatpush1.msra.mxu0 %v301
        %325 = vmatprep.subr.mxu0 0.0
        %326 = vmatpush1.msra.mxu0 %v302
        %327 = vmatprep.subr.mxu0 0.0
        %328 = vmatpush1.msra.mxu0 %v303
        %329 = vmatprep.subr.mxu0 0.0
        %330 = vmatpush1.msra.mxu0 %v304
        %331 = vmatprep.subr.mxu0 0.0
        %332 = vmatpush1.msra.mxu0 %v305
        %333 = vmatprep.subr.mxu0 0.0
        %334 = vmatpush1.msra.mxu0 %v306
        %335 = vmatprep.subr.mxu0 0.0
        %336 = vmatpush1.msra.mxu0 %v307
        %337 = vmatprep.subr.mxu0 0.0
        %338 = vmatpush1.msra.mxu0 %v308
        %339 = vmatprep.subr.mxu0 0.0
        %340 = vmatpush1.msra.mxu0 %v309
        %341 = vmatprep.subr.mxu0 0.0
        %342 = vmatpush1.msra.mxu0 %v310
        %343 = vmatprep.subr.mxu0 0.0
        %344 = vmatpush1.msra.mxu0 0.0
        %345 = vmatprep.subr.mxu0 0.0
        %346 = vmatpush1.msra.mxu0 0.0
        %347 = vmatprep.subr.mxu0 0.0
        %348 = vmatpush1.msra.mxu0 0.0
        %349 = vmatprep.subr.mxu0 0.0
        %350 = vmatpush1.msra.mxu0 0.0
        %351 = vmatprep.subr.mxu0 0.0
        %352 = vmatpush1.msra.mxu0 0.0
        %353 = vmatprep.subr.mxu0 0.0
        %354 = vmatpush1.msra.mxu0 0.0
        %355 = vmatprep.subr.mxu0 0.0
        %356 = vmatpush1.msra.mxu0 0.0
        %357 = vmatprep.subr.mxu0 0.0
        %358 = vmatpush1.msra.mxu0 0.0
        %359 = vmatprep.subr.mxu0 0.0
        %360 = vmatpush1.msra.mxu0 0.0
        %361 = vmatprep.subr.mxu0 0.0
        %362 = vmatpush1.msra.mxu0 0.0
        %363 = vmatprep.subr.mxu0 0.0
        %364 = vmatpush1.msra.mxu0 0.0
        %365 = vmatprep.subr.mxu0 0.0
        %366 = vmatpush1.msra.mxu0 0.0
        %367 = vmatprep.subr.mxu0 0.0
        %368 = vmatpush1.msra.mxu0 0.0
        %369 = vmatprep.subr.mxu0 0.0
        %370 = vmatpush1.msra.mxu0 0.0
        %371 = vmatprep.subr.mxu0 0.0
        %372 = vmatpush1.msra.mxu0 0.0
        %373 = vmatprep.subr.mxu0 0.0
        %374 = vmatpush1.msra.mxu0 0.0
        %375 = vmatprep.mubr.f32.mxu0 0.0
        %376 = vmatmul.mubr.f32.gmra.mrb[0].mxu0 %v279
        %v377 = vpop.f32.mrb[0].mxu0
        %v378 = vadd.f32 0.0, %v377
        %v379 = vpop.f32.mrb[0].mxu0
        %380 = vmatprep.mubr.f32.mxu0 0.0
        %381 = vmatmul.mubr.f32.gmra.mrb[0].mxu0 %v280
        %v382 = vpop.f32.mrb[0].mxu0
        %v383 = vadd.f32 0.0, %v382
        %v384 = vpop.f32.mrb[0].mxu0
        %385 = vmatprep.mubr.f32.mxu0 0.0
        %386 = vmatmul.mubr.f32.gmra.mrb[0].mxu0 %v281
        %v387 = vpop.f32.mrb[0].mxu0
        %v388 = vadd.f32 0.0, %v387
        %v389 = vpop.f32.mrb[0].mxu0
        %390 = vmatprep.mubr.f32.mxu0 0.0
        %391 = vmatmul.mubr.f32.gmra.mrb[0].mxu0 %v282
        %v392 = vpop.f32.mrb[0].mxu0
        %v393 = vadd.f32 0.0, %v392
        %v394 = vpop.f32.mrb[0].mxu0
        %395 = vmatprep.mubr.f32.mxu0 0.0
        %396 = vmatmul.mubr.f32.gmra.mrb[0].mxu0 %v283
        %v397 = vpop.f32.mrb[0].mxu0
        %v398 = vadd.f32 0.0, %v397
        %v399 = vpop.f32.mrb[0].mxu0
        %400 = vmatprep.mubr.f32.mxu0 0.0
        %401 = vmatmul.mubr.f32.gmra.mrb[0].mxu0 %v284
        %v402 = vpop.f32.mrb[0].mxu0
        %v403 = vadd.f32 0.0, %v402
        %v404 = vpop.f32.mrb[0].mxu0
        %405 = vmatprep.mubr.f32.mxu0 0.0
        %406 = vmatmul.mubr.f32.gmra.mrb[0].mxu0 %v285
        %v407 = vpop.f32.mrb[0].mxu0
        %v408 = vadd.f32 0.0, %v407
        %v409 = vpop.f32.mrb[0].mxu0
        %410 = vmatprep.mubr.f32.mxu0 0.0
        %411 = vmatmul.mubr.f32.gmra.mrb[0].mxu0 %v286
        %v412 = vpop.f32.mrb[0].mxu0
        %v413 = vadd.f32 0.0, %v412
        %v414 = vpop.f32.mrb[0].mxu0
        %415 = vmatprep.mubr.f32.mxu0 0.0
        %416 = vmatmul.mubr.f32.gmra.mrb[0].mxu0 %v287
        %v417 = vpop.f32.mrb[0].mxu0
        %v418 = vadd.f32 0.0, %v417
        %v419 = vpop.f32.mrb[0].mxu0
        %420 = vmatprep.mubr.f32.mxu0 0.0
        %421 = vmatmul.mubr.f32.gmra.mrb[0].mxu0 %v288
        %v422 = vpop.f32.mrb[0].mxu0
        %v423 = vadd.f32 0.0, %v422
        %v424 = vpop.f32.mrb[0].mxu0
        %425 = vmatprep.mubr.f32.mxu0 0.0
        %426 = vmatmul.mubr.f32.gmra.mrb[0].mxu0 %v289
        %v427 = vpop.f32.mrb[0].mxu0
        %v428 = vadd.f32 0.0, %v427
        %v429 = vpop.f32.mrb[0].mxu0
        %430 = vmatprep.mubr.f32.mxu0 0.0
        %431 = vmatmul.mubr.f32.gmra.mrb[0].mxu0 %v290
        %v432 = vpop.f32.mrb[0].mxu0
        %v433 = vadd.f32 0.0, %v432
        %v434 = vpop.f32.mrb[0].mxu0
        %435 = vmatprep.mubr.f32.mxu0 0.0
        %436 = vmatmul.mubr.f32.gmra.mrb[0].mxu0 %v291
        %v437 = vpop.f32.mrb[0].mxu0
        %v438 = vadd.f32 0.0, %v437
        %v439 = vpop.f32.mrb[0].mxu0
        %440 = vmatprep.mubr.f32.mxu0 0.0
        %441 = vmatmul.mubr.f32.gmra.mrb[0].mxu0 %v292
        %v442 = vpop.f32.mrb[0].mxu0
        %v443 = vadd.f32 0.0, %v442
        %v444 = vpop.f32.mrb[0].mxu0
        %445 = vmatprep.mubr.f32.mxu0 0.0
        %446 = vmatmul.mubr.f32.gmra.mrb[0].mxu0 %v293
        %v447 = vpop.f32.mrb[0].mxu0
        %v448 = vadd.f32 0.0, %v447
        %v449 = vpop.f32.mrb[0].mxu0
        %450 = vmatprep.mubr.f32.mxu0 0.0
        %451 = vmatmul.mubr.f32.gmra.mrb[0].mxu0 %v294
        %v452 = vpop.f32.mrb[0].mxu0
        %v453 = vadd.f32 0.0, %v452
        %v454 = vpop.f32.mrb[0].mxu0
        %455 = vdwg.mxu0
        %v456 = vmul.f32 %v378, 0.088388346
        %v457 = vmul.f32 %v383, 0.088388346
        %v458 = vmul.f32 %v388, 0.088388346
        %v459 = vmul.f32 %v393, 0.088388346
        %v460 = vmul.f32 %v398, 0.088388346
        %v461 = vmul.f32 %v403, 0.088388346
        %v462 = vmul.f32 %v408, 0.088388346
        %v463 = vmul.f32 %v413, 0.088388346
        %v464 = vmul.f32 %v418, 0.088388346
        %v465 = vmul.f32 %v423, 0.088388346
        %v466 = vmul.f32 %v428, 0.088388346
        %v467 = vmul.f32 %v433, 0.088388346
        %v468 = vmul.f32 %v438, 0.088388346
        %v469 = vmul.f32 %v443, 0.088388346
        %v470 = vmul.f32 %v448, 0.088388346
        %v471 = vmul.f32 %v453, 0.088388346
        %v472 = vld [vmem:[#allocation8] sm:$0xff]
        %v473 = vld [vmem:[#allocation8 + $0x8] sm:$0xff]
        %v474 = vld [vmem:[#allocation8 + $0x10] sm:$0xff]
        %v475 = vld [vmem:[#allocation8 + $0x18] sm:$0xff]
        %v476 = vld [vmem:[#allocation8 + $0x20] sm:$0xff]
        %v477 = vld [vmem:[#allocation8 + $0x28] sm:$0xff]
        %v478 = vld [vmem:[#allocation8 + $0x30] sm:$0xff]
        %v479 = vld [vmem:[#allocation8 + $0x38] sm:$0xff]
        %v480 = vld [vmem:[#allocation8 + $0x40] sm:$0xff]
        %v481 = vld [vmem:[#allocation8 + $0x48] sm:$0xff]
        %v482 = vld [vmem:[#allocation8 + $0x50] sm:$0xff]
        %v483 = vld [vmem:[#allocation8 + $0x58] sm:$0xff]
        %v484 = vld [vmem:[#allocation8 + $0x60] sm:$0xff]
        %v485 = vld [vmem:[#allocation8 + $0x68] sm:$0xff]
        %v486 = vld [vmem:[#allocation8 + $0x70] sm:$0xff]
        %v487 = vld [vmem:[#allocation8 + $0x78] sm:$0xff]
        %v488 = vld [vmem:[#allocation5] sm:$0xff]
        %v489 = vld [vmem:[#allocation5 + $0x8] sm:$0xff]
        %v490 = vld [vmem:[#allocation5 + $0x10] sm:$0xff]
        %v491 = vld [vmem:[#allocation5 + $0x18] sm:$0xff]
        %v492 = vld [vmem:[#allocation5 + $0x20] sm:$0xff]
        %v493 = vld [vmem:[#allocation5 + $0x28] sm:$0xff]
        %v494 = vld [vmem:[#allocation5 + $0x30] sm:$0xff]
        %v495 = vld [vmem:[#allocation5 + $0x38] sm:$0xff]
        %v496 = vld [vmem:[#allocation5 + $0x40] sm:$0xff]
        %v497 = vld [vmem:[#allocation5 + $0x48] sm:$0xff]
        %v498 = vld [vmem:[#allocation5 + $0x50] sm:$0xff]
        %v499 = vld [vmem:[#allocation5 + $0x58] sm:$0xff]
        %v500 = vld [vmem:[#allocation5 + $0x60] sm:$0xff]
        %v501 = vld [vmem:[#allocation5 + $0x68] sm:$0xff]
        %v502 = vld [vmem:[#allocation5 + $0x70] sm:$0xff]
        %v503 = vld [vmem:[#allocation5 + $0x78] sm:$0xff]
        %v504 = vld [vmem:[#allocation5 + $0x80] sm:$0xff]
        %v505 = vld [vmem:[#allocation5 + $0x88] sm:$0xff]
        %v506 = vld [vmem:[#allocation5 + $0x90] sm:$0xff]
        %v507 = vld [vmem:[#allocation5 + $0x98] sm:$0xff]
        %v508 = vld [vmem:[#allocation5 + $0xa0] sm:$0xff]
        %v509 = vld [vmem:[#allocation5 + $0xa8] sm:$0xff]
        %v510 = vld [vmem:[#allocation5 + $0xb0] sm:$0xff]
        %v511 = vld [vmem:[#allocation5 + $0xb8] sm:$0xff]
        %v512 = vld [vmem:[#allocation5 + $0xc0] sm:$0xff]
        %v513 = vld [vmem:[#allocation5 + $0xc8] sm:$0xff]
        %v514 = vld [vmem:[#allocation5 + $0xd0] sm:$0xff]
        %v515 = vld [vmem:[#allocation5 + $0xd8] sm:$0xff]
        %v516 = vld [vmem:[#allocation5 + $0xe0] sm:$0xff]
        %v517 = vld [vmem:[#allocation5 + $0xe8] sm:$0xff]
        %v518 = vld [vmem:[#allocation5 + $0xf0] sm:$0xff]
        %v519 = vld [vmem:[#allocation5 + $0xf8] sm:$0xff]
        %v520 = vld [vmem:[#allocation5 + $0x100] sm:$0xff]
        %v521 = vld [vmem:[#allocation5 + $0x108] sm:$0xff]
        %v522 = vld [vmem:[#allocation5 + $0x110] sm:$0xff]
        %v523 = vld [vmem:[#allocation5 + $0x118] sm:$0xff]
        %v524 = vld [vmem:[#allocation5 + $0x120] sm:$0xff]
        %v525 = vld [vmem:[#allocation5 + $0x128] sm:$0xff]
        %v526 = vld [vmem:[#allocation5 + $0x130] sm:$0xff]
        %v527 = vld [vmem:[#allocation5 + $0x138] sm:$0xff]
        %v528 = vld [vmem:[#allocation5 + $0x140] sm:$0xff]
        %v529 = vld [vmem:[#allocation5 + $0x148] sm:$0xff]
        %v530 = vld [vmem:[#allocation5 + $0x150] sm:$0xff]
        %v531 = vld [vmem:[#allocation5 + $0x158] sm:$0xff]
        %v532 = vld [vmem:[#allocation5 + $0x160] sm:$0xff]
        %v533 = vld [vmem:[#allocation5 + $0x168] sm:$0xff]
        %v534 = vld [vmem:[#allocation5 + $0x170] sm:$0xff]
        %v535 = vld [vmem:[#allocation5 + $0x178] sm:$0xff]
        %v536 = vld [vmem:[#allocation5 + $0x180] sm:$0xff]
        %v537 = vld [vmem:[#allocation5 + $0x188] sm:$0xff]
        %v538 = vld [vmem:[#allocation5 + $0x190] sm:$0xff]
        %v539 = vld [vmem:[#allocation5 + $0x198] sm:$0xff]
        %v540 = vld [vmem:[#allocation5 + $0x1a0] sm:$0xff]
        %v541 = vld [vmem:[#allocation5 + $0x1a8] sm:$0xff]
        %v542 = vld [vmem:[#allocation5 + $0x1b0] sm:$0xff]
        %v543 = vld [vmem:[#allocation5 + $0x1b8] sm:$0xff]
        %v544 = vld [vmem:[#allocation5 + $0x1c0] sm:$0xff]
        %v545 = vld [vmem:[#allocation5 + $0x1c8] sm:$0xff]
        %v546 = vld [vmem:[#allocation5 + $0x1d0] sm:$0xff]
        %v547 = vld [vmem:[#allocation5 + $0x1d8] sm:$0xff]
        %v548 = vld [vmem:[#allocation5 + $0x1e0] sm:$0xff]
        %v549 = vld [vmem:[#allocation5 + $0x1e8] sm:$0xff]
        %v550 = vld [vmem:[#allocation5 + $0x1f0] sm:$0xff]
        %v551 = vld [vmem:[#allocation5 + $0x1f8] sm:$0xff]
        %552 = vmatprep.subr.mxu0 %v489
        %553 = vmatpush1.msra.mxu0 %v488
        %554 = vmatprep.subr.mxu0 %v493
        %555 = vmatpush1.msra.mxu0 %v492
        %556 = vmatprep.subr.mxu0 %v497
        %557 = vmatpush1.msra.mxu0 %v496
        %558 = vmatprep.subr.mxu0 %v501
        %559 = vmatpush1.msra.mxu0 %v500
        %560 = vmatprep.subr.mxu0 %v505
        %561 = vmatpush1.msra.mxu0 %v504
        %562 = vmatprep.subr.mxu0 %v509
        %563 = vmatpush1.msra.mxu0 %v508
        %564 = vmatprep.subr.mxu0 %v513
        %565 = vmatpush1.msra.mxu0 %v512
        %566 = vmatprep.subr.mxu0 %v517
        %567 = vmatpush1.msra.mxu0 %v516
        %568 = vmatprep.subr.mxu0 %v521
        %569 = vmatpush1.msra.mxu0 %v520
        %570 = vmatprep.subr.mxu0 %v525
        %571 = vmatpush1.msra.mxu0 %v524
        %572 = vmatprep.subr.mxu0 %v529
        %573 = vmatpush1.msra.mxu0 %v528
        %574 = vmatprep.subr.mxu0 %v533
        %575 = vmatpush1.msra.mxu0 %v532
        %576 = vmatprep.subr.mxu0 %v537
        %577 = vmatpush1.msra.mxu0 %v536
        %578 = vmatprep.subr.mxu0 %v541
        %579 = vmatpush1.msra.mxu0 %v540
        %580 = vmatprep.subr.mxu0 %v545
        %581 = vmatpush1.msra.mxu0 %v544
        %582 = vmatprep.subr.mxu0 %v549
        %583 = vmatpush1.msra.mxu0 %v548
        %584 = vmatprep.subr.mxu0 0.0
        %585 = vmatpush1.msra.mxu0 0.0
        %586 = vmatprep.subr.mxu0 0.0
        %587 = vmatpush1.msra.mxu0 0.0
        %588 = vmatprep.subr.mxu0 0.0
        %589 = vmatpush1.msra.mxu0 0.0
        %590 = vmatprep.subr.mxu0 0.0
        %591 = vmatpush1.msra.mxu0 0.0
        %592 = vmatprep.subr.mxu0 0.0
        %593 = vmatpush1.msra.mxu0 0.0
        %594 = vmatprep.subr.mxu0 0.0
        %595 = vmatpush1.msra.mxu0 0.0
        %596 = vmatprep.subr.mxu0 0.0
        %597 = vmatpush1.msra.mxu0 0.0
        %598 = vmatprep.subr.mxu0 0.0
        %599 = vmatpush1.msra.mxu0 0.0
        %600 = vmatprep.subr.mxu0 0.0
        %601 = vmatpush1.msra.mxu0 0.0
        %602 = vmatprep.subr.mxu0 0.0
        %603 = vmatpush1.msra.mxu0 0.0
        %604 = vmatprep.subr.mxu0 0.0
        %605 = vmatpush1.msra.mxu0 0.0
        %606 = vmatprep.subr.mxu0 0.0
        %607 = vmatpush1.msra.mxu0 0.0
        %608 = vmatprep.subr.mxu0 0.0
        %609 = vmatpush1.msra.mxu0 0.0
        %610 = vmatprep.subr.mxu0 0.0
        %611 = vmatpush1.msra.mxu0 0.0
        %612 = vmatprep.subr.mxu0 0.0
        %613 = vmatpush1.msra.mxu0 0.0
        %614 = vmatprep.subr.mxu0 0.0
        %615 = vmatpush1.msra.mxu0 0.0
        %616 = vmatprep.mubr.f32.mxu0 0.0
        %617 = vmatmul.mubr.f32.gmra.mrb[0].mxu0 %v472
        %v618 = vpop.f32.mrb[0].mxu0
        %v619 = vadd.f32 0.0, %v618
        %v620 = vpop.f32.mrb[0].mxu0
        %v621 = vadd.f32 0.0, %v620
        %622 = vmatprep.mubr.f32.mxu0 0.0
        %623 = vmatmul.mubr.f32.gmra.mrb[0].mxu0 %v473
        %v624 = vpop.f32.mrb[0].mxu0
        %v625 = vadd.f32 0.0, %v624
        %v626 = vpop.f32.mrb[0].mxu0
        %v627 = vadd.f32 0.0, %v626
        %628 = vmatprep.mubr.f32.mxu0 0.0
        %629 = vmatmul.mubr.f32.gmra.mrb[0].mxu0 %v474
        %v630 = vpop.f32.mrb[0].mxu0
        %v631 = vadd.f32 0.0, %v630
        %v632 = vpop.f32.mrb[0].mxu0
        %v633 = vadd.f32 0.0, %v632
        %634 = vmatprep.mubr.f32.mxu0 0.0
        %635 = vmatmul.mubr.f32.gmra.mrb[0].mxu0 %v475
        %v636 = vpop.f32.mrb[0].mxu0
        %v637 = vadd.f32 0.0, %v636
        %v638 = vpop.f32.mrb[0].mxu0
        %v639 = vadd.f32 0.0, %v638
        %640 = vmatprep.mubr.f32.mxu0 0.0
        %641 = vmatmul.mubr.f32.gmra.mrb[0].mxu0 %v476
        %v642 = vpop.f32.mrb[0].mxu0
        %v643 = vadd.f32 0.0, %v642
        %v644 = vpop.f32.mrb[0].mxu0
        %v645 = vadd.f32 0.0, %v644
        %646 = vmatprep.mubr.f32.mxu0 0.0
        %647 = vmatmul.mubr.f32.gmra.mrb[0].mxu0 %v477
        %v648 = vpop.f32.mrb[0].mxu0
        %v649 = vadd.f32 0.0, %v648
        %v650 = vpop.f32.mrb[0].mxu0
        %v651 = vadd.f32 0.0, %v650
        %652 = vmatprep.mubr.f32.mxu0 0.0
        %653 = vmatmul.mubr.f32.gmra.mrb[0].mxu0 %v478
        %v654 = vpop.f32.mrb[0].mxu0
        %v655 = vadd.f32 0.0, %v654
        %v656 = vpop.f32.mrb[0].mxu0
        %v657 = vadd.f32 0.0, %v656
        %658 = vmatprep.mubr.f32.mxu0 0.0
        %659 = vmatmul.mubr.f32.gmra.mrb[0].mxu0 %v479
        %v660 = vpop.f32.mrb[0].mxu0
        %v661 = vadd.f32 0.0, %v660
        %v662 = vpop.f32.mrb[0].mxu0
        %v663 = vadd.f32 0.0, %v662
        %664 = vmatprep.mubr.f32.mxu0 0.0
        %665 = vmatmul.mubr.f32.gmra.mrb[0].mxu0 %v480
        %v666 = vpop.f32.mrb[0].mxu0
        %v667 = vadd.f32 0.0, %v666
        %v668 = vpop.f32.mrb[0].mxu0
        %v669 = vadd.f32 0.0, %v668
        %670 = vmatprep.mubr.f32.mxu0 0.0
        %671 = vmatmul.mubr.f32.gmra.mrb[0].mxu0 %v481
        %v672 = vpop.f32.mrb[0].mxu0
        %v673 = vadd.f32 0.0, %v672
        %v674 = vpop.f32.mrb[0].mxu0
        %v675 = vadd.f32 0.0, %v674
        %676 = vmatprep.mubr.f32.mxu0 0.0
        %677 = vmatmul.mubr.f32.gmra.mrb[0].mxu0 %v482
        %v678 = vpop.f32.mrb[0].mxu0
        %v679 = vadd.f32 0.0, %v678
        %v680 = vpop.f32.mrb[0].mxu0
        %v681 = vadd.f32 0.0, %v680
        %682 = vmatprep.mubr.f32.mxu0 0.0
        %683 = vmatmul.mubr.f32.gmra.mrb[0].mxu0 %v483
        %v684 = vpop.f32.mrb[0].mxu0
        %v685 = vadd.f32 0.0, %v684
        %v686 = vpop.f32.mrb[0].mxu0
        %v687 = vadd.f32 0.0, %v686
        %688 = vmatprep.mubr.f32.mxu0 0.0
        %689 = vmatmul.mubr.f32.gmra.mrb[0].mxu0 %v484
        %v690 = vpop.f32.mrb[0].mxu0
        %v691 = vadd.f32 0.0, %v690
        %v692 = vpop.f32.mrb[0].mxu0
        %v693 = vadd.f32 0.0, %v692
        %694 = vmatprep.mubr.f32.mxu0 0.0
        %695 = vmatmul.mubr.f32.gmra.mrb[0].mxu0 %v485
        %v696 = vpop.f32.mrb[0].mxu0
        %v697 = vadd.f32 0.0, %v696
        %v698 = vpop.f32.mrb[0].mxu0
        %v699 = vadd.f32 0.0, %v698
        %700 = vmatprep.mubr.f32.mxu0 0.0
        %701 = vmatmul.mubr.f32.gmra.mrb[0].mxu0 %v486
        %v702 = vpop.f32.mrb[0].mxu0
        %v703 = vadd.f32 0.0, %v702
        %v704 = vpop.f32.mrb[0].mxu0
        %v705 = vadd.f32 0.0, %v704
        %706 = vmatprep.mubr.f32.mxu0 0.0
        %707 = vmatmul.mubr.f32.gmra.mrb[0].mxu0 %v487
        %v708 = vpop.f32.mrb[0].mxu0
        %v709 = vadd.f32 0.0, %v708
        %v710 = vpop.f32.mrb[0].mxu0
        %v711 = vadd.f32 0.0, %v710
        %712 = vdwg.mxu0
        %713 = vmatprep.subr.mxu0 %v491
        %714 = vmatpush1.msra.mxu0 %v490
        %715 = vmatprep.subr.mxu0 %v495
        %716 = vmatpush1.msra.mxu0 %v494
        %717 = vmatprep.subr.mxu0 %v499
        %718 = vmatpush1.msra.mxu0 %v498
        %719 = vmatprep.subr.mxu0 %v503
        %720 = vmatpush1.msra.mxu0 %v502
        %721 = vmatprep.subr.mxu0 %v507
        %722 = vmatpush1.msra.mxu0 %v506
        %723 = vmatprep.subr.mxu0 %v511
        %724 = vmatpush1.msra.mxu0 %v510
        %725 = vmatprep.subr.mxu0 %v515
        %726 = vmatpush1.msra.mxu0 %v514
        %727 = vmatprep.subr.mxu0 %v519
        %728 = vmatpush1.msra.mxu0 %v518
        %729 = vmatprep.subr.mxu0 %v523
        %730 = vmatpush1.msra.mxu0 %v522
        %731 = vmatprep.subr.mxu0 %v527
        %732 = vmatpush1.msra.mxu0 %v526
        %733 = vmatprep.subr.mxu0 %v531
        %734 = vmatpush1.msra.mxu0 %v530
        %735 = vmatprep.subr.mxu0 %v535
        %736 = vmatpush1.msra.mxu0 %v534
        %737 = vmatprep.subr.mxu0 %v539
        %738 = vmatpush1.msra.mxu0 %v538
        %739 = vmatprep.subr.mxu0 %v543
        %740 = vmatpush1.msra.mxu0 %v542
        %741 = vmatprep.subr.mxu0 %v547
        %742 = vmatpush1.msra.mxu0 %v546
        %743 = vmatprep.subr.mxu0 %v551
        %744 = vmatpush1.msra.mxu0 %v550
        %745 = vmatprep.subr.mxu0 0.0
        %746 = vmatpush1.msra.mxu0 0.0
        %747 = vmatprep.subr.mxu0 0.0
        %748 = vmatpush1.msra.mxu0 0.0
        %749 = vmatprep.subr.mxu0 0.0
        %750 = vmatpush1.msra.mxu0 0.0
        %751 = vmatprep.subr.mxu0 0.0
        %752 = vmatpush1.msra.mxu0 0.0
        %753 = vmatprep.subr.mxu0 0.0
        %754 = vmatpush1.msra.mxu0 0.0
        %755 = vmatprep.subr.mxu0 0.0
        %756 = vmatpush1.msra.mxu0 0.0
        %757 = vmatprep.subr.mxu0 0.0
        %758 = vmatpush1.msra.mxu0 0.0
        %759 = vmatprep.subr.mxu0 0.0
        %760 = vmatpush1.msra.mxu0 0.0
        %761 = vmatprep.subr.mxu0 0.0
        %762 = vmatpush1.msra.mxu0 0.0
        %763 = vmatprep.subr.mxu0 0.0
        %764 = vmatpush1.msra.mxu0 0.0
        %765 = vmatprep.subr.mxu0 0.0
        %766 = vmatpush1.msra.mxu0 0.0
        %767 = vmatprep.subr.mxu0 0.0
        %768 = vmatpush1.msra.mxu0 0.0
        %769 = vmatprep.subr.mxu0 0.0
        %770 = vmatpush1.msra.mxu0 0.0
        %771 = vmatprep.subr.mxu0 0.0
        %772 = vmatpush1.msra.mxu0 0.0
        %773 = vmatprep.subr.mxu0 0.0
        %774 = vmatpush1.msra.mxu0 0.0
        %775 = vmatprep.subr.mxu0 0.0
        %776 = vmatpush1.msra.mxu0 0.0
        %777 = vmatprep.mubr.f32.mxu0 0.0
        %778 = vmatmul.mubr.f32.gmra.mrb[0].mxu0 %v472
        %v779 = vpop.f32.mrb[0].mxu0
        %v780 = vadd.f32 0.0, %v779
        %v781 = vpop.f32.mrb[0].mxu0
        %v782 = vadd.f32 0.0, %v781
        %783 = vmatprep.mubr.f32.mxu0 0.0
        %784 = vmatmul.mubr.f32.gmra.mrb[0].mxu0 %v473
        %v785 = vpop.f32.mrb[0].mxu0
        %v786 = vadd.f32 0.0, %v785
        %v787 = vpop.f32.mrb[0].mxu0
        %v788 = vadd.f32 0.0, %v787
        %789 = vmatprep.mubr.f32.mxu0 0.0
        %790 = vmatmul.mubr.f32.gmra.mrb[0].mxu0 %v474
        %v791 = vpop.f32.mrb[0].mxu0
        %v792 = vadd.f32 0.0, %v791
        %v793 = vpop.f32.mrb[0].mxu0
        %v794 = vadd.f32 0.0, %v793
        %795 = vmatprep.mubr.f32.mxu0 0.0
        %796 = vmatmul.mubr.f32.gmra.mrb[0].mxu0 %v475
        %v797 = vpop.f32.mrb[0].mxu0
        %v798 = vadd.f32 0.0, %v797
        %v799 = vpop.f32.mrb[0].mxu0
        %v800 = vadd.f32 0.0, %v799
        %801 = vmatprep.mubr.f32.mxu0 0.0
        %802 = vmatmul.mubr.f32.gmra.mrb[0].mxu0 %v476
        %v803 = vpop.f32.mrb[0].mxu0
        %v804 = vadd.f32 0.0, %v803
        %v805 = vpop.f32.mrb[0].mxu0
        %v806 = vadd.f32 0.0, %v805
        %807 = vmatprep.mubr.f32.mxu0 0.0
        %808 = vmatmul.mubr.f32.gmra.mrb[0].mxu0 %v477
        %v809 = vpop.f32.mrb[0].mxu0
        %v810 = vadd.f32 0.0, %v809
        %v811 = vpop.f32.mrb[0].mxu0
        %v812 = vadd.f32 0.0, %v811
        %813 = vmatprep.mubr.f32.mxu0 0.0
        %814 = vmatmul.mubr.f32.gmra.mrb[0].mxu0 %v478
        %v815 = vpop.f32.mrb[0].mxu0
        %v816 = vadd.f32 0.0, %v815
        %v817 = vpop.f32.mrb[0].mxu0
        %v818 = vadd.f32 0.0, %v817
        %819 = vmatprep.mubr.f32.mxu0 0.0
        %820 = vmatmul.mubr.f32.gmra.mrb[0].mxu0 %v479
        %v821 = vpop.f32.mrb[0].mxu0
        %v822 = vadd.f32 0.0, %v821
        %v823 = vpop.f32.mrb[0].mxu0
        %v824 = vadd.f32 0.0, %v823
        %825 = vmatprep.mubr.f32.mxu0 0.0
        %826 = vmatmul.mubr.f32.gmra.mrb[0].mxu0 %v480
        %v827 = vpop.f32.mrb[0].mxu0
        %v828 = vadd.f32 0.0, %v827
        %v829 = vpop.f32.mrb[0].mxu0
        %v830 = vadd.f32 0.0, %v829
        %831 = vmatprep.mubr.f32.mxu0 0.0
        %832 = vmatmul.mubr.f32.gmra.mrb[0].mxu0 %v481
        %v833 = vpop.f32.mrb[0].mxu0
        %v834 = vadd.f32 0.0, %v833
        %v835 = vpop.f32.mrb[0].mxu0
        %v836 = vadd.f32 0.0, %v835
        %837 = vmatprep.mubr.f32.mxu0 0.0
        %838 = vmatmul.mubr.f32.gmra.mrb[0].mxu0 %v482
        %v839 = vpop.f32.mrb[0].mxu0
        %v840 = vadd.f32 0.0, %v839
        %v841 = vpop.f32.mrb[0].mxu0
        %v842 = vadd.f32 0.0, %v841
        %843 = vmatprep.mubr.f32.mxu0 0.0
        %844 = vmatmul.mubr.f32.gmra.mrb[0].mxu0 %v483
        %v845 = vpop.f32.mrb[0].mxu0
        %v846 = vadd.f32 0.0, %v845
        %v847 = vpop.f32.mrb[0].mxu0
        %v848 = vadd.f32 0.0, %v847
        %849 = vmatprep.mubr.f32.mxu0 0.0
        %850 = vmatmul.mubr.f32.gmra.mrb[0].mxu0 %v484
        %v851 = vpop.f32.mrb[0].mxu0
        %v852 = vadd.f32 0.0, %v851
        %v853 = vpop.f32.mrb[0].mxu0
        %v854 = vadd.f32 0.0, %v853
        %855 = vmatprep.mubr.f32.mxu0 0.0
        %856 = vmatmul.mubr.f32.gmra.mrb[0].mxu0 %v485
        %v857 = vpop.f32.mrb[0].mxu0
        %v858 = vadd.f32 0.0, %v857
        %v859 = vpop.f32.mrb[0].mxu0
        %v860 = vadd.f32 0.0, %v859
        %861 = vmatprep.mubr.f32.mxu0 0.0
        %862 = vmatmul.mubr.f32.gmra.mrb[0].mxu0 %v486
        %v863 = vpop.f32.mrb[0].mxu0
        %v864 = vadd.f32 0.0, %v863
        %v865 = vpop.f32.mrb[0].mxu0
        %v866 = vadd.f32 0.0, %v865
        %867 = vmatprep.mubr.f32.mxu0 0.0
        %868 = vmatmul.mubr.f32.gmra.mrb[0].mxu0 %v487
        %v869 = vpop.f32.mrb[0].mxu0
        %v870 = vadd.f32 0.0, %v869
        %v871 = vpop.f32.mrb[0].mxu0
        %v872 = vadd.f32 0.0, %v871
        %873 = vdwg.mxu0
        %v874 = vld [vmem:[#allocation2] sm:$0xff]
        %v875 = vld [vmem:[#allocation2 + $0x8] sm:$0xff]
        %v876 = vld [vmem:[#allocation2 + $0x10] sm:$0xff]
        %v877 = vld [vmem:[#allocation2 + $0x18] sm:$0xff]
        %v878 = vld [vmem:[#allocation2 + $0x20] sm:$0xff]
        %v879 = vld [vmem:[#allocation2 + $0x28] sm:$0xff]
        %v880 = vld [vmem:[#allocation2 + $0x30] sm:$0xff]
        %v881 = vld [vmem:[#allocation2 + $0x38] sm:$0xff]
        %v882 = vld [vmem:[#allocation2 + $0x40] sm:$0xff]
        %v883 = vld [vmem:[#allocation2 + $0x48] sm:$0xff]
        %v884 = vld [vmem:[#allocation2 + $0x50] sm:$0xff]
        %v885 = vld [vmem:[#allocation2 + $0x58] sm:$0xff]
        %v886 = vld [vmem:[#allocation2 + $0x60] sm:$0xff]
        %v887 = vld [vmem:[#allocation2 + $0x68] sm:$0xff]
        %v888 = vld [vmem:[#allocation2 + $0x70] sm:$0xff]
        %v889 = vld [vmem:[#allocation2 + $0x78] sm:$0xff]
        %v890 = vld [vmem:[#allocation2 + $0x80] sm:$0xff]
        %v891 = vld [vmem:[#allocation2 + $0x88] sm:$0xff]
        %v892 = vld [vmem:[#allocation2 + $0x90] sm:$0xff]
        %v893 = vld [vmem:[#allocation2 + $0x98] sm:$0xff]
        %v894 = vld [vmem:[#allocation2 + $0xa0] sm:$0xff]
        %v895 = vld [vmem:[#allocation2 + $0xa8] sm:$0xff]
        %v896 = vld [vmem:[#allocation2 + $0xb0] sm:$0xff]
        %v897 = vld [vmem:[#allocation2 + $0xb8] sm:$0xff]
        %v898 = vld [vmem:[#allocation2 + $0xc0] sm:$0xff]
        %v899 = vld [vmem:[#allocation2 + $0xc8] sm:$0xff]
        %v900 = vld [vmem:[#allocation2 + $0xd0] sm:$0xff]
        %v901 = vld [vmem:[#allocation2 + $0xd8] sm:$0xff]
        %v902 = vld [vmem:[#allocation2 + $0xe0] sm:$0xff]
        %v903 = vld [vmem:[#allocation2 + $0xe8] sm:$0xff]
        %v904 = vld [vmem:[#allocation2 + $0xf0] sm:$0xff]
        %v905 = vld [vmem:[#allocation2 + $0xf8] sm:$0xff]
        %v906 = vld [vmem:[#allocation2 + $0x100] sm:$0xff]
        %v907 = vld [vmem:[#allocation2 + $0x108] sm:$0xff]
        %v908 = vld [vmem:[#allocation2 + $0x110] sm:$0xff]
        %v909 = vld [vmem:[#allocation2 + $0x118] sm:$0xff]
        %v910 = vld [vmem:[#allocation2 + $0x120] sm:$0xff]
        %v911 = vld [vmem:[#allocation2 + $0x128] sm:$0xff]
        %v912 = vld [vmem:[#allocation2 + $0x130] sm:$0xff]
        %v913 = vld [vmem:[#allocation2 + $0x138] sm:$0xff]
        %v914 = vld [vmem:[#allocation2 + $0x140] sm:$0xff]
        %v915 = vld [vmem:[#allocation2 + $0x148] sm:$0xff]
        %v916 = vld [vmem:[#allocation2 + $0x150] sm:$0xff]
        %v917 = vld [vmem:[#allocation2 + $0x158] sm:$0xff]
        %v918 = vld [vmem:[#allocation2 + $0x160] sm:$0xff]
        %v919 = vld [vmem:[#allocation2 + $0x168] sm:$0xff]
        %v920 = vld [vmem:[#allocation2 + $0x170] sm:$0xff]
        %v921 = vld [vmem:[#allocation2 + $0x178] sm:$0xff]
        %v922 = vld [vmem:[#allocation2 + $0x180] sm:$0xff]
        %v923 = vld [vmem:[#allocation2 + $0x188] sm:$0xff]
        %v924 = vld [vmem:[#allocation2 + $0x190] sm:$0xff]
        %v925 = vld [vmem:[#allocation2 + $0x198] sm:$0xff]
        %v926 = vld [vmem:[#allocation2 + $0x1a0] sm:$0xff]
        %v927 = vld [vmem:[#allocation2 + $0x1a8] sm:$0xff]
        %v928 = vld [vmem:[#allocation2 + $0x1b0] sm:$0xff]
        %v929 = vld [vmem:[#allocation2 + $0x1b8] sm:$0xff]
        %v930 = vld [vmem:[#allocation2 + $0x1c0] sm:$0xff]
        %v931 = vld [vmem:[#allocation2 + $0x1c8] sm:$0xff]
        %v932 = vld [vmem:[#allocation2 + $0x1d0] sm:$0xff]
        %v933 = vld [vmem:[#allocation2 + $0x1d8] sm:$0xff]
        %v934 = vld [vmem:[#allocation2 + $0x1e0] sm:$0xff]
        %v935 = vld [vmem:[#allocation2 + $0x1e8] sm:$0xff]
        %v936 = vld [vmem:[#allocation2 + $0x1f0] sm:$0xff]
        %v937 = vld [vmem:[#allocation2 + $0x1f8] sm:$0xff]
        %v938 = vld [vmem:[#allocation10] sm:$0xff]
        %v939 = vld [vmem:[#allocation10 + $0x8] sm:$0xff]
        %v940 = vld [vmem:[#allocation10 + $0x10] sm:$0xff]
        %v941 = vld [vmem:[#allocation10 + $0x18] sm:$0xff]
        %v942 = vld [vmem:[#allocation10 + $0x20] sm:$0xff]
        %v943 = vld [vmem:[#allocation10 + $0x28] sm:$0xff]
        %v944 = vld [vmem:[#allocation10 + $0x30] sm:$0xff]
        %v945 = vld [vmem:[#allocation10 + $0x38] sm:$0xff]
        %v946 = vld [vmem:[#allocation10 + $0x40] sm:$0xff]
        %v947 = vld [vmem:[#allocation10 + $0x48] sm:$0xff]
        %v948 = vld [vmem:[#allocation10 + $0x50] sm:$0xff]
        %v949 = vld [vmem:[#allocation10 + $0x58] sm:$0xff]
        %v950 = vld [vmem:[#allocation10 + $0x60] sm:$0xff]
        %v951 = vld [vmem:[#allocation10 + $0x68] sm:$0xff]
        %v952 = vld [vmem:[#allocation10 + $0x70] sm:$0xff]
        %v953 = vld [vmem:[#allocation10 + $0x78] sm:$0xff]
        %954 = vmatprep.subr.mxu0 0.0
        %955 = vmatpush1.msra.mxu0 %v938
        %956 = vmatprep.subr.mxu0 0.0
        %957 = vmatpush1.msra.mxu0 %v939
        %958 = vmatprep.subr.mxu0 0.0
        %959 = vmatpush1.msra.mxu0 %v940
        %960 = vmatprep.subr.mxu0 0.0
        %961 = vmatpush1.msra.mxu0 %v941
        %962 = vmatprep.subr.mxu0 0.0
        %963 = vmatpush1.msra.mxu0 %v942
        %964 = vmatprep.subr.mxu0 0.0
        %965 = vmatpush1.msra.mxu0 %v943
        %966 = vmatprep.subr.mxu0 0.0
        %967 = vmatpush1.msra.mxu0 %v944
        %968 = vmatprep.subr.mxu0 0.0
        %969 = vmatpush1.msra.mxu0 %v945
        %970 = vmatprep.subr.mxu0 0.0
        %971 = vmatpush1.msra.mxu0 %v946
        %972 = vmatprep.subr.mxu0 0.0
        %973 = vmatpush1.msra.mxu0 %v947
        %974 = vmatprep.subr.mxu0 0.0
        %975 = vmatpush1.msra.mxu0 %v948
        %976 = vmatprep.subr.mxu0 0.0
        %977 = vmatpush1.msra.mxu0 %v949
        %978 = vmatprep.subr.mxu0 0.0
        %979 = vmatpush1.msra.mxu0 %v950
        %980 = vmatprep.subr.mxu0 0.0
        %981 = vmatpush1.msra.mxu0 %v951
        %982 = vmatprep.subr.mxu0 0.0
        %983 = vmatpush1.msra.mxu0 %v952
        %984 = vmatprep.subr.mxu0 0.0
        %985 = vmatpush1.msra.mxu0 %v953
        %986 = vmatprep.subr.mxu0 0.0
        %987 = vmatpush1.msra.mxu0 0.0
        %988 = vmatprep.subr.mxu0 0.0
        %989 = vmatpush1.msra.mxu0 0.0
        %990 = vmatprep.subr.mxu0 0.0
        %991 = vmatpush1.msra.mxu0 0.0
        %992 = vmatprep.subr.mxu0 0.0
        %993 = vmatpush1.msra.mxu0 0.0
        %994 = vmatprep.subr.mxu0 0.0
        %995 = vmatpush1.msra.mxu0 0.0
        %996 = vmatprep.subr.mxu0 0.0
        %997 = vmatpush1.msra.mxu0 0.0
        %998 = vmatprep.subr.mxu0 0.0
        %999 = vmatpush1.msra.mxu0 0.0
        %1000 = vmatprep.subr.mxu0 0.0
        %1001 = vmatpush1.msra.mxu0 0.0
        %1002 = vmatprep.subr.mxu0 0.0
        %1003 = vmatpush1.msra.mxu0 0.0
        %1004 = vmatprep.subr.mxu0 0.0
        %1005 = vmatpush1.msra.mxu0 0.0
        %1006 = vmatprep.subr.mxu0 0.0
        %1007 = vmatpush1.msra.mxu0 0.0
        %1008 = vmatprep.subr.mxu0 0.0
        %1009 = vmatpush1.msra.mxu0 0.0
        %1010 = vmatprep.subr.mxu0 0.0
        %1011 = vmatpush1.msra.mxu0 0.0
        %1012 = vmatprep.subr.mxu0 0.0
        %1013 = vmatpush1.msra.mxu0 0.0
        %1014 = vmatprep.subr.mxu0 0.0
        %1015 = vmatpush1.msra.mxu0 0.0
        %1016 = vmatprep.subr.mxu0 0.0
        %1017 = vmatpush1.msra.mxu0 0.0
        %1018 = vmatprep.mubr.f32.mxu0 0.0
        %1019 = vmatmul.mubr.f32.gmra.mrb[0].mxu0 %v874
        %v1020 = vpop.f32.mrb[0].mxu0
        %v1021 = vadd.f32 0.0, %v1020
        %v1022 = vpop.f32.mrb[0].mxu0
        %1023 = vmatprep.mubr.f32.mxu0 0.0
        %1024 = vmatmul.mubr.f32.gmra.mrb[0].mxu0 %v875
        %v1025 = vpop.f32.mrb[0].mxu0
        %v1026 = vadd.f32 0.0, %v1025
        %v1027 = vpop.f32.mrb[0].mxu0
        %1028 = vmatprep.mubr.f32.mxu0 0.0
        %1029 = vmatmul.mubr.f32.gmra.mrb[0].mxu0 %v876
        %v1030 = vpop.f32.mrb[0].mxu0
        %v1031 = vadd.f32 0.0, %v1030
        %v1032 = vpop.f32.mrb[0].mxu0
        %1033 = vmatprep.mubr.f32.mxu0 0.0
        %1034 = vmatmul.mubr.f32.gmra.mrb[0].mxu0 %v877
        %v1035 = vpop.f32.mrb[0].mxu0
        %v1036 = vadd.f32 0.0, %v1035
        %v1037 = vpop.f32.mrb[0].mxu0
        %1038 = vmatprep.mubr.f32.mxu0 0.0
        %1039 = vmatmul.mubr.f32.gmra.mrb[0].mxu0 %v878
        %v1040 = vpop.f32.mrb[0].mxu0
        %v1041 = vadd.f32 0.0, %v1040
        %v1042 = vpop.f32.mrb[0].mxu0
        %1043 = vmatprep.mubr.f32.mxu0 0.0
        %1044 = vmatmul.mubr.f32.gmra.mrb[0].mxu0 %v879
        %v1045 = vpop.f32.mrb[0].mxu0
        %v1046 = vadd.f32 0.0, %v1045
        %v1047 = vpop.f32.mrb[0].mxu0
        %1048 = vmatprep.mubr.f32.mxu0 0.0
        %1049 = vmatmul.mubr.f32.gmra.mrb[0].mxu0 %v880
        %v1050 = vpop.f32.mrb[0].mxu0
        %v1051 = vadd.f32 0.0, %v1050
        %v1052 = vpop.f32.mrb[0].mxu0
        %1053 = vmatprep.mubr.f32.mxu0 0.0
        %1054 = vmatmul.mubr.f32.gmra.mrb[0].mxu0 %v881
        %v1055 = vpop.f32.mrb[0].mxu0
        %v1056 = vadd.f32 0.0, %v1055
        %v1057 = vpop.f32.mrb[0].mxu0
        %1058 = vmatprep.mubr.f32.mxu0 0.0
        %1059 = vmatmul.mubr.f32.gmra.mrb[0].mxu0 %v882
        %v1060 = vpop.f32.mrb[0].mxu0
        %v1061 = vadd.f32 0.0, %v1060
        %v1062 = vpop.f32.mrb[0].mxu0
        %1063 = vmatprep.mubr.f32.mxu0 0.0
        %1064 = vmatmul.mubr.f32.gmra.mrb[0].mxu0 %v883
        %v1065 = vpop.f32.mrb[0].mxu0
        %v1066 = vadd.f32 0.0, %v1065
        %v1067 = vpop.f32.mrb[0].mxu0
        %1068 = vmatprep.mubr.f32.mxu0 0.0
        %1069 = vmatmul.mubr.f32.gmra.mrb[0].mxu0 %v884
        %v1070 = vpop.f32.mrb[0].mxu0
        %v1071 = vadd.f32 0.0, %v1070
        %v1072 = vpop.f32.mrb[0].mxu0
        %1073 = vmatprep.mubr.f32.mxu0 0.0
        %1074 = vmatmul.mubr.f32.gmra.mrb[0].mxu0 %v885
        %v1075 = vpop.f32.mrb[0].mxu0
        %v1076 = vadd.f32 0.0, %v1075
        %v1077 = vpop.f32.mrb[0].mxu0
        %1078 = vmatprep.mubr.f32.mxu0 0.0
        %1079 = vmatmul.mubr.f32.gmra.mrb[0].mxu0 %v886
        %v1080 = vpop.f32.mrb[0].mxu0
        %v1081 = vadd.f32 0.0, %v1080
        %v1082 = vpop.f32.mrb[0].mxu0
        %1083 = vmatprep.mubr.f32.mxu0 0.0
        %1084 = vmatmul.mubr.f32.gmra.mrb[0].mxu0 %v887
        %v1085 = vpop.f32.mrb[0].mxu0
        %v1086 = vadd.f32 0.0, %v1085
        %v1087 = vpop.f32.mrb[0].mxu0
        %1088 = vmatprep.mubr.f32.mxu0 0.0
        %1089 = vmatmul.mubr.f32.gmra.mrb[0].mxu0 %v888
        %v1090 = vpop.f32.mrb[0].mxu0
        %v1091 = vadd.f32 0.0, %v1090
        %v1092 = vpop.f32.mrb[0].mxu0
        %1093 = vmatprep.mubr.f32.mxu0 0.0
        %1094 = vmatmul.mubr.f32.gmra.mrb[0].mxu0 %v889
        %v1095 = vpop.f32.mrb[0].mxu0
        %v1096 = vadd.f32 0.0, %v1095
        %v1097 = vpop.f32.mrb[0].mxu0
        %1098 = vmatprep.mubr.f32.mxu0 0.0
        %1099 = vmatmul.mubr.f32.gmra.mrb[0].mxu0 %v890
        %v1100 = vpop.f32.mrb[0].mxu0
        %v1101 = vadd.f32 0.0, %v1100
        %v1102 = vpop.f32.mrb[0].mxu0
        %1103 = vmatprep.mubr.f32.mxu0 0.0
        %1104 = vmatmul.mubr.f32.gmra.mrb[0].mxu0 %v891
        %v1105 = vpop.f32.mrb[0].mxu0
        %v1106 = vadd.f32 0.0, %v1105
        %v1107 = vpop.f32.mrb[0].mxu0
        %1108 = vmatprep.mubr.f32.mxu0 0.0
        %1109 = vmatmul.mubr.f32.gmra.mrb[0].mxu0 %v892
        %v1110 = vpop.f32.mrb[0].mxu0
        %v1111 = vadd.f32 0.0, %v1110
        %v1112 = vpop.f32.mrb[0].mxu0
        %1113 = vmatprep.mubr.f32.mxu0 0.0
        %1114 = vmatmul.mubr.f32.gmra.mrb[0].mxu0 %v893
        %v1115 = vpop.f32.mrb[0].mxu0
        %v1116 = vadd.f32 0.0, %v1115
        %v1117 = vpop.f32.mrb[0].mxu0
        %1118 = vmatprep.mubr.f32.mxu0 0.0
        %1119 = vmatmul.mubr.f32.gmra.mrb[0].mxu0 %v894
        %v1120 = vpop.f32.mrb[0].mxu0
        %v1121 = vadd.f32 0.0, %v1120
        %v1122 = vpop.f32.mrb[0].mxu0
        %1123 = vmatprep.mubr.f32.mxu0 0.0
        %1124 = vmatmul.mubr.f32.gmra.mrb[0].mxu0 %v895
        %v1125 = vpop.f32.mrb[0].mxu0
        %v1126 = vadd.f32 0.0, %v1125
        %v1127 = vpop.f32.mrb[0].mxu0
        %1128 = vmatprep.mubr.f32.mxu0 0.0
        %1129 = vmatmul.mubr.f32.gmra.mrb[0].mxu0 %v896
        %v1130 = vpop.f32.mrb[0].mxu0
        %v1131 = vadd.f32 0.0, %v1130
        %v1132 = vpop.f32.mrb[0].mxu0
        %1133 = vmatprep.mubr.f32.mxu0 0.0
        %1134 = vmatmul.mubr.f32.gmra.mrb[0].mxu0 %v897
        %v1135 = vpop.f32.mrb[0].mxu0
        %v1136 = vadd.f32 0.0, %v1135
        %v1137 = vpop.f32.mrb[0].mxu0
        %1138 = vmatprep.mubr.f32.mxu0 0.0
        %1139 = vmatmul.mubr.f32.gmra.mrb[0].mxu0 %v898
        %v1140 = vpop.f32.mrb[0].mxu0
        %v1141 = vadd.f32 0.0, %v1140
        %v1142 = vpop.f32.mrb[0].mxu0
        %1143 = vmatprep.mubr.f32.mxu0 0.0
        %1144 = vmatmul.mubr.f32.gmra.mrb[0].mxu0 %v899
        %v1145 = vpop.f32.mrb[0].mxu0
        %v1146 = vadd.f32 0.0, %v1145
        %v1147 = vpop.f32.mrb[0].mxu0
        %1148 = vmatprep.mubr.f32.mxu0 0.0
        %1149 = vmatmul.mubr.f32.gmra.mrb[0].mxu0 %v900
        %v1150 = vpop.f32.mrb[0].mxu0
        %v1151 = vadd.f32 0.0, %v1150
        %v1152 = vpop.f32.mrb[0].mxu0
        %1153 = vmatprep.mubr.f32.mxu0 0.0
        %1154 = vmatmul.mubr.f32.gmra.mrb[0].mxu0 %v901
        %v1155 = vpop.f32.mrb[0].mxu0
        %v1156 = vadd.f32 0.0, %v1155
        %v1157 = vpop.f32.mrb[0].mxu0
        %1158 = vmatprep.mubr.f32.mxu0 0.0
        %1159 = vmatmul.mubr.f32.gmra.mrb[0].mxu0 %v902
        %v1160 = vpop.f32.mrb[0].mxu0
        %v1161 = vadd.f32 0.0, %v1160
        %v1162 = vpop.f32.mrb[0].mxu0
        %1163 = vmatprep.mubr.f32.mxu0 0.0
        %1164 = vmatmul.mubr.f32.gmra.mrb[0].mxu0 %v903
        %v1165 = vpop.f32.mrb[0].mxu0
        %v1166 = vadd.f32 0.0, %v1165
        %v1167 = vpop.f32.mrb[0].mxu0
        %1168 = vmatprep.mubr.f32.mxu0 0.0
        %1169 = vmatmul.mubr.f32.gmra.mrb[0].mxu0 %v904
        %v1170 = vpop.f32.mrb[0].mxu0
        %v1171 = vadd.f32 0.0, %v1170
        %v1172 = vpop.f32.mrb[0].mxu0
        %1173 = vmatprep.mubr.f32.mxu0 0.0
        %1174 = vmatmul.mubr.f32.gmra.mrb[0].mxu0 %v905
        %v1175 = vpop.f32.mrb[0].mxu0
        %v1176 = vadd.f32 0.0, %v1175
        %v1177 = vpop.f32.mrb[0].mxu0
        %1178 = vmatprep.mubr.f32.mxu0 0.0
        %1179 = vmatmul.mubr.f32.gmra.mrb[0].mxu0 %v906
        %v1180 = vpop.f32.mrb[0].mxu0
        %v1181 = vadd.f32 0.0, %v1180
        %v1182 = vpop.f32.mrb[0].mxu0
        %1183 = vmatprep.mubr.f32.mxu0 0.0
        %1184 = vmatmul.mubr.f32.gmra.mrb[0].mxu0 %v907
        %v1185 = vpop.f32.mrb[0].mxu0
        %v1186 = vadd.f32 0.0, %v1185
        %v1187 = vpop.f32.mrb[0].mxu0
        %1188 = vmatprep.mubr.f32.mxu0 0.0
        %1189 = vmatmul.mubr.f32.gmra.mrb[0].mxu0 %v908
        %v1190 = vpop.f32.mrb[0].mxu0
        %v1191 = vadd.f32 0.0, %v1190
        %v1192 = vpop.f32.mrb[0].mxu0
        %1193 = vmatprep.mubr.f32.mxu0 0.0
        %1194 = vmatmul.mubr.f32.gmra.mrb[0].mxu0 %v909
        %v1195 = vpop.f32.mrb[0].mxu0
        %v1196 = vadd.f32 0.0, %v1195
        %v1197 = vpop.f32.mrb[0].mxu0
        %1198 = vmatprep.mubr.f32.mxu0 0.0
        %1199 = vmatmul.mubr.f32.gmra.mrb[0].mxu0 %v910
        %v1200 = vpop.f32.mrb[0].mxu0
        %v1201 = vadd.f32 0.0, %v1200
        %v1202 = vpop.f32.mrb[0].mxu0
        %1203 = vmatprep.mubr.f32.mxu0 0.0
        %1204 = vmatmul.mubr.f32.gmra.mrb[0].mxu0 %v911
        %v1205 = vpop.f32.mrb[0].mxu0
        %v1206 = vadd.f32 0.0, %v1205
        %v1207 = vpop.f32.mrb[0].mxu0
        %1208 = vmatprep.mubr.f32.mxu0 0.0
        %1209 = vmatmul.mubr.f32.gmra.mrb[0].mxu0 %v912
        %v1210 = vpop.f32.mrb[0].mxu0
        %v1211 = vadd.f32 0.0, %v1210
        %v1212 = vpop.f32.mrb[0].mxu0
        %1213 = vmatprep.mubr.f32.mxu0 0.0
        %1214 = vmatmul.mubr.f32.gmra.mrb[0].mxu0 %v913
        %v1215 = vpop.f32.mrb[0].mxu0
        %v1216 = vadd.f32 0.0, %v1215
        %v1217 = vpop.f32.mrb[0].mxu0
        %1218 = vmatprep.mubr.f32.mxu0 0.0
        %1219 = vmatmul.mubr.f32.gmra.mrb[0].mxu0 %v914
        %v1220 = vpop.f32.mrb[0].mxu0
        %v1221 = vadd.f32 0.0, %v1220
        %v1222 = vpop.f32.mrb[0].mxu0
        %1223 = vmatprep.mubr.f32.mxu0 0.0
        %1224 = vmatmul.mubr.f32.gmra.mrb[0].mxu0 %v915
        %v1225 = vpop.f32.mrb[0].mxu0
        %v1226 = vadd.f32 0.0, %v1225
        %v1227 = vpop.f32.mrb[0].mxu0
        %1228 = vmatprep.mubr.f32.mxu0 0.0
        %1229 = vmatmul.mubr.f32.gmra.mrb[0].mxu0 %v916
        %v1230 = vpop.f32.mrb[0].mxu0
        %v1231 = vadd.f32 0.0, %v1230
        %v1232 = vpop.f32.mrb[0].mxu0
        %1233 = vmatprep.mubr.f32.mxu0 0.0
        %1234 = vmatmul.mubr.f32.gmra.mrb[0].mxu0 %v917
        %v1235 = vpop.f32.mrb[0].mxu0
        %v1236 = vadd.f32 0.0, %v1235
        %v1237 = vpop.f32.mrb[0].mxu0
        %1238 = vmatprep.mubr.f32.mxu0 0.0
        %1239 = vmatmul.mubr.f32.gmra.mrb[0].mxu0 %v918
        %v1240 = vpop.f32.mrb[0].mxu0
        %v1241 = vadd.f32 0.0, %v1240
        %v1242 = vpop.f32.mrb[0].mxu0
        %1243 = vmatprep.mubr.f32.mxu0 0.0
        %1244 = vmatmul.mubr.f32.gmra.mrb[0].mxu0 %v919
        %v1245 = vpop.f32.mrb[0].mxu0
        %v1246 = vadd.f32 0.0, %v1245
        %v1247 = vpop.f32.mrb[0].mxu0
        %1248 = vmatprep.mubr.f32.mxu0 0.0
        %1249 = vmatmul.mubr.f32.gmra.mrb[0].mxu0 %v920
        %v1250 = vpop.f32.mrb[0].mxu0
        %v1251 = vadd.f32 0.0, %v1250
        %v1252 = vpop.f32.mrb[0].mxu0
        %1253 = vmatprep.mubr.f32.mxu0 0.0
        %1254 = vmatmul.mubr.f32.gmra.mrb[0].mxu0 %v921
        %v1255 = vpop.f32.mrb[0].mxu0
        %v1256 = vadd.f32 0.0, %v1255
        %v1257 = vpop.f32.mrb[0].mxu0
        %1258 = vmatprep.mubr.f32.mxu0 0.0
        %1259 = vmatmul.mubr.f32.gmra.mrb[0].mxu0 %v922
        %v1260 = vpop.f32.mrb[0].mxu0
        %v1261 = vadd.f32 0.0, %v1260
        %v1262 = vpop.f32.mrb[0].mxu0
        %1263 = vmatprep.mubr.f32.mxu0 0.0
        %1264 = vmatmul.mubr.f32.gmra.mrb[0].mxu0 %v923
        %v1265 = vpop.f32.mrb[0].mxu0
        %v1266 = vadd.f32 0.0, %v1265
        %v1267 = vpop.f32.mrb[0].mxu0
        %1268 = vmatprep.mubr.f32.mxu0 0.0
        %1269 = vmatmul.mubr.f32.gmra.mrb[0].mxu0 %v924
        %v1270 = vpop.f32.mrb[0].mxu0
        %v1271 = vadd.f32 0.0, %v1270
        %v1272 = vpop.f32.mrb[0].mxu0
        %1273 = vmatprep.mubr.f32.mxu0 0.0
        %1274 = vmatmul.mubr.f32.gmra.mrb[0].mxu0 %v925
        %v1275 = vpop.f32.mrb[0].mxu0
        %v1276 = vadd.f32 0.0, %v1275
        %v1277 = vpop.f32.mrb[0].mxu0
        %1278 = vmatprep.mubr.f32.mxu0 0.0
        %1279 = vmatmul.mubr.f32.gmra.mrb[0].mxu0 %v926
        %v1280 = vpop.f32.mrb[0].mxu0
        %v1281 = vadd.f32 0.0, %v1280
        %v1282 = vpop.f32.mrb[0].mxu0
        %1283 = vmatprep.mubr.f32.mxu0 0.0
        %1284 = vmatmul.mubr.f32.gmra.mrb[0].mxu0 %v927
        %v1285 = vpop.f32.mrb[0].mxu0
        %v1286 = vadd.f32 0.0, %v1285
        %v1287 = vpop.f32.mrb[0].mxu0
        %1288 = vmatprep.mubr.f32.mxu0 0.0
        %1289 = vmatmul.mubr.f32.gmra.mrb[0].mxu0 %v928
        %v1290 = vpop.f32.mrb[0].mxu0
        %v1291 = vadd.f32 0.0, %v1290
        %v1292 = vpop.f32.mrb[0].mxu0
        %1293 = vmatprep.mubr.f32.mxu0 0.0
        %1294 = vmatmul.mubr.f32.gmra.mrb[0].mxu0 %v929
        %v1295 = vpop.f32.mrb[0].mxu0
        %v1296 = vadd.f32 0.0, %v1295
        %v1297 = vpop.f32.mrb[0].mxu0
        %1298 = vmatprep.mubr.f32.mxu0 0.0
        %1299 = vmatmul.mubr.f32.gmra.mrb[0].mxu0 %v930
        %v1300 = vpop.f32.mrb[0].mxu0
        %v1301 = vadd.f32 0.0, %v1300
        %v1302 = vpop.f32.mrb[0].mxu0
        %1303 = vmatprep.mubr.f32.mxu0 0.0
        %1304 = vmatmul.mubr.f32.gmra.mrb[0].mxu0 %v931
        %v1305 = vpop.f32.mrb[0].mxu0
        %v1306 = vadd.f32 0.0, %v1305
        %v1307 = vpop.f32.mrb[0].mxu0
        %1308 = vmatprep.mubr.f32.mxu0 0.0
        %1309 = vmatmul.mubr.f32.gmra.mrb[0].mxu0 %v932
        %v1310 = vpop.f32.mrb[0].mxu0
        %v1311 = vadd.f32 0.0, %v1310
        %v1312 = vpop.f32.mrb[0].mxu0
        %1313 = vmatprep.mubr.f32.mxu0 0.0
        %1314 = vmatmul.mubr.f32.gmra.mrb[0].mxu0 %v933
        %v1315 = vpop.f32.mrb[0].mxu0
        %v1316 = vadd.f32 0.0, %v1315
        %v1317 = vpop.f32.mrb[0].mxu0
        %1318 = vmatprep.mubr.f32.mxu0 0.0
        %1319 = vmatmul.mubr.f32.gmra.mrb[0].mxu0 %v934
        %v1320 = vpop.f32.mrb[0].mxu0
        %v1321 = vadd.f32 0.0, %v1320
        %v1322 = vpop.f32.mrb[0].mxu0
        %1323 = vmatprep.mubr.f32.mxu0 0.0
        %1324 = vmatmul.mubr.f32.gmra.mrb[0].mxu0 %v935
        %v1325 = vpop.f32.mrb[0].mxu0
        %v1326 = vadd.f32 0.0, %v1325
        %v1327 = vpop.f32.mrb[0].mxu0
        %1328 = vmatprep.mubr.f32.mxu0 0.0
        %1329 = vmatmul.mubr.f32.gmra.mrb[0].mxu0 %v936
        %v1330 = vpop.f32.mrb[0].mxu0
        %v1331 = vadd.f32 0.0, %v1330
        %v1332 = vpop.f32.mrb[0].mxu0
        %1333 = vmatprep.mubr.f32.mxu0 0.0
        %1334 = vmatmul.mubr.f32.gmra.mrb[0].mxu0 %v937
        %v1335 = vpop.f32.mrb[0].mxu0
        %v1336 = vadd.f32 0.0, %v1335
        %v1337 = vpop.f32.mrb[0].mxu0
        %1338 = vdwg.mxu0
        %1339 = vmatprep.subr.mxu0 %v621
        %1340 = vmatpush1.msra.mxu0 %v619
        %1341 = vmatprep.subr.mxu0 %v627
        %1342 = vmatpush1.msra.mxu0 %v625
        %1343 = vmatprep.subr.mxu0 %v633
        %1344 = vmatpush1.msra.mxu0 %v631
        %1345 = vmatprep.subr.mxu0 %v639
        %1346 = vmatpush1.msra.mxu0 %v637
        %1347 = vmatprep.subr.mxu0 %v645
        %1348 = vmatpush1.msra.mxu0 %v643
        %1349 = vmatprep.subr.mxu0 %v651
        %1350 = vmatpush1.msra.mxu0 %v649
        %1351 = vmatprep.subr.mxu0 %v657
        %1352 = vmatpush1.msra.mxu0 %v655
        %1353 = vmatprep.subr.mxu0 %v663
        %1354 = vmatpush1.msra.mxu0 %v661
        %1355 = vmatprep.subr.mxu0 %v669
        %1356 = vmatpush1.msra.mxu0 %v667
        %1357 = vmatprep.subr.mxu0 %v675
        %1358 = vmatpush1.msra.mxu0 %v673
        %1359 = vmatprep.subr.mxu0 %v681
        %1360 = vmatpush1.msra.mxu0 %v679
        %1361 = vmatprep.subr.mxu0 %v687
        %1362 = vmatpush1.msra.mxu0 %v685
        %1363 = vmatprep.subr.mxu0 %v693
        %1364 = vmatpush1.msra.mxu0 %v691
        %1365 = vmatprep.subr.mxu0 %v699
        %1366 = vmatpush1.msra.mxu0 %v697
        %1367 = vmatprep.subr.mxu0 %v705
        %1368 = vmatpush1.msra.mxu0 %v703
        %1369 = vmatprep.subr.mxu0 %v711
        %1370 = vmatpush1.msra.mxu0 %v709
        %1371 = vmatprep.subr.mxu0 0.0
        %1372 = vmatpush1.msra.mxu0 0.0
        %1373 = vmatprep.subr.mxu0 0.0
        %1374 = vmatpush1.msra.mxu0 0.0
        %1375 = vmatprep.subr.mxu0 0.0
        %1376 = vmatpush1.msra.mxu0 0.0
        %1377 = vmatprep.subr.mxu0 0.0
        %1378 = vmatpush1.msra.mxu0 0.0
        %1379 = vmatprep.subr.mxu0 0.0
        %1380 = vmatpush1.msra.mxu0 0.0
        %1381 = vmatprep.subr.mxu0 0.0
        %1382 = vmatpush1.msra.mxu0 0.0
        %1383 = vmatprep.subr.mxu0 0.0
        %1384 = vmatpush1.msra.mxu0 0.0
        %1385 = vmatprep.subr.mxu0 0.0
        %1386 = vmatpush1.msra.mxu0 0.0
        %1387 = vmatprep.subr.mxu0 0.0
        %1388 = vmatpush1.msra.mxu0 0.0
        %1389 = vmatprep.subr.mxu0 0.0
        %1390 = vmatpush1.msra.mxu0 0.0
        %1391 = vmatprep.subr.mxu0 0.0
        %1392 = vmatpush1.msra.mxu0 0.0
        %1393 = vmatprep.subr.mxu0 0.0
        %1394 = vmatpush1.msra.mxu0 0.0
        %1395 = vmatprep.subr.mxu0 0.0
        %1396 = vmatpush1.msra.mxu0 0.0
        %1397 = vmatprep.subr.mxu0 0.0
        %1398 = vmatpush1.msra.mxu0 0.0
        %1399 = vmatprep.subr.mxu0 0.0
        %1400 = vmatpush1.msra.mxu0 0.0
        %1401 = vmatprep.subr.mxu0 0.0
        %1402 = vmatpush1.msra.mxu0 0.0
        %1403 = vmatprep.mubr.f32.mxu0 0.0
        %1404 = vmatmul.mubr.f32.gmra.mrb[0].mxu0 %v456
        %v1405 = vpop.f32.mrb[0].mxu0
        %v1406 = vadd.f32 0.0, %v1405
        %v1407 = vpop.f32.mrb[0].mxu0
        %v1408 = vadd.f32 0.0, %v1407
        %1409 = vmatprep.mubr.f32.mxu0 0.0
        %1410 = vmatmul.mubr.f32.gmra.mrb[0].mxu0 %v457
        %v1411 = vpop.f32.mrb[0].mxu0
        %v1412 = vadd.f32 0.0, %v1411
        %v1413 = vpop.f32.mrb[0].mxu0
        %v1414 = vadd.f32 0.0, %v1413
        %1415 = vmatprep.mubr.f32.mxu0 0.0
        %1416 = vmatmul.mubr.f32.gmra.mrb[0].mxu0 %v458
        %v1417 = vpop.f32.mrb[0].mxu0
        %v1418 = vadd.f32 0.0, %v1417
        %v1419 = vpop.f32.mrb[0].mxu0
        %v1420 = vadd.f32 0.0, %v1419
        %1421 = vmatprep.mubr.f32.mxu0 0.0
        %1422 = vmatmul.mubr.f32.gmra.mrb[0].mxu0 %v459
        %v1423 = vpop.f32.mrb[0].mxu0
        %v1424 = vadd.f32 0.0, %v1423
        %v1425 = vpop.f32.mrb[0].mxu0
        %v1426 = vadd.f32 0.0, %v1425
        %1427 = vmatprep.mubr.f32.mxu0 0.0
        %1428 = vmatmul.mubr.f32.gmra.mrb[0].mxu0 %v460
        %v1429 = vpop.f32.mrb[0].mxu0
        %v1430 = vadd.f32 0.0, %v1429
        %v1431 = vpop.f32.mrb[0].mxu0
        %v1432 = vadd.f32 0.0, %v1431
        %1433 = vmatprep.mubr.f32.mxu0 0.0
        %1434 = vmatmul.mubr.f32.gmra.mrb[0].mxu0 %v461
        %v1435 = vpop.f32.mrb[0].mxu0
        %v1436 = vadd.f32 0.0, %v1435
        %v1437 = vpop.f32.mrb[0].mxu0
        %v1438 = vadd.f32 0.0, %v1437
        %1439 = vmatprep.mubr.f32.mxu0 0.0
        %1440 = vmatmul.mubr.f32.gmra.mrb[0].mxu0 %v462
        %v1441 = vpop.f32.mrb[0].mxu0
        %v1442 = vadd.f32 0.0, %v1441
        %v1443 = vpop.f32.mrb[0].mxu0
        %v1444 = vadd.f32 0.0, %v1443
        %1445 = vmatprep.mubr.f32.mxu0 0.0
        %1446 = vmatmul.mubr.f32.gmra.mrb[0].mxu0 %v463
        %v1447 = vpop.f32.mrb[0].mxu0
        %v1448 = vadd.f32 0.0, %v1447
        %v1449 = vpop.f32.mrb[0].mxu0
        %v1450 = vadd.f32 0.0, %v1449
        %1451 = vmatprep.mubr.f32.mxu0 0.0
        %1452 = vmatmul.mubr.f32.gmra.mrb[0].mxu0 %v464
        %v1453 = vpop.f32.mrb[0].mxu0
        %v1454 = vadd.f32 0.0, %v1453
        %v1455 = vpop.f32.mrb[0].mxu0
        %v1456 = vadd.f32 0.0, %v1455
        %1457 = vmatprep.mubr.f32.mxu0 0.0
        %1458 = vmatmul.mubr.f32.gmra.mrb[0].mxu0 %v465
        %v1459 = vpop.f32.mrb[0].mxu0
        %v1460 = vadd.f32 0.0, %v1459
        %v1461 = vpop.f32.mrb[0].mxu0
        %v1462 = vadd.f32 0.0, %v1461
        %1463 = vmatprep.mubr.f32.mxu0 0.0
        %1464 = vmatmul.mubr.f32.gmra.mrb[0].mxu0 %v466
        %v1465 = vpop.f32.mrb[0].mxu0
        %v1466 = vadd.f32 0.0, %v1465
        %v1467 = vpop.f32.mrb[0].mxu0
        %v1468 = vadd.f32 0.0, %v1467
        %1469 = vmatprep.mubr.f32.mxu0 0.0
        %1470 = vmatmul.mubr.f32.gmra.mrb[0].mxu0 %v467
        %v1471 = vpop.f32.mrb[0].mxu0
        %v1472 = vadd.f32 0.0, %v1471
        %v1473 = vpop.f32.mrb[0].mxu0
        %v1474 = vadd.f32 0.0, %v1473
        %1475 = vmatprep.mubr.f32.mxu0 0.0
        %1476 = vmatmul.mubr.f32.gmra.mrb[0].mxu0 %v468
        %v1477 = vpop.f32.mrb[0].mxu0
        %v1478 = vadd.f32 0.0, %v1477
        %v1479 = vpop.f32.mrb[0].mxu0
        %v1480 = vadd.f32 0.0, %v1479
        %1481 = vmatprep.mubr.f32.mxu0 0.0
        %1482 = vmatmul.mubr.f32.gmra.mrb[0].mxu0 %v469
        %v1483 = vpop.f32.mrb[0].mxu0
        %v1484 = vadd.f32 0.0, %v1483
        %v1485 = vpop.f32.mrb[0].mxu0
        %v1486 = vadd.f32 0.0, %v1485
        %1487 = vmatprep.mubr.f32.mxu0 0.0
        %1488 = vmatmul.mubr.f32.gmra.mrb[0].mxu0 %v470
        %v1489 = vpop.f32.mrb[0].mxu0
        %v1490 = vadd.f32 0.0, %v1489
        %v1491 = vpop.f32.mrb[0].mxu0
        %v1492 = vadd.f32 0.0, %v1491
        %1493 = vmatprep.mubr.f32.mxu0 0.0
        %1494 = vmatmul.mubr.f32.gmra.mrb[0].mxu0 %v471
        %v1495 = vpop.f32.mrb[0].mxu0
        %v1496 = vadd.f32 0.0, %v1495
        %v1497 = vpop.f32.mrb[0].mxu0
        %v1498 = vadd.f32 0.0, %v1497
        %1499 = vdwg.mxu0
        %1500 = vmatprep.subr.mxu0 %v782
        %1501 = vmatpush1.msra.mxu0 %v780
        %1502 = vmatprep.subr.mxu0 %v788
        %1503 = vmatpush1.msra.mxu0 %v786
        %1504 = vmatprep.subr.mxu0 %v794
        %1505 = vmatpush1.msra.mxu0 %v792
        %1506 = vmatprep.subr.mxu0 %v800
        %1507 = vmatpush1.msra.mxu0 %v798
        %1508 = vmatprep.subr.mxu0 %v806
        %1509 = vmatpush1.msra.mxu0 %v804
        %1510 = vmatprep.subr.mxu0 %v812
        %1511 = vmatpush1.msra.mxu0 %v810
        %1512 = vmatprep.subr.mxu0 %v818
        %1513 = vmatpush1.msra.mxu0 %v816
        %1514 = vmatprep.subr.mxu0 %v824
        %1515 = vmatpush1.msra.mxu0 %v822
        %1516 = vmatprep.subr.mxu0 %v830
        %1517 = vmatpush1.msra.mxu0 %v828
        %1518 = vmatprep.subr.mxu0 %v836
        %1519 = vmatpush1.msra.mxu0 %v834
        %1520 = vmatprep.subr.mxu0 %v842
        %1521 = vmatpush1.msra.mxu0 %v840
        %1522 = vmatprep.subr.mxu0 %v848
        %1523 = vmatpush1.msra.mxu0 %v846
        %1524 = vmatprep.subr.mxu0 %v854
        %1525 = vmatpush1.msra.mxu0 %v852
        %1526 = vmatprep.subr.mxu0 %v860
        %1527 = vmatpush1.msra.mxu0 %v858
        %1528 = vmatprep.subr.mxu0 %v866
        %1529 = vmatpush1.msra.mxu0 %v864
        %1530 = vmatprep.subr.mxu0 %v872
        %1531 = vmatpush1.msra.mxu0 %v870
        %1532 = vmatprep.subr.mxu0 0.0
        %1533 = vmatpush1.msra.mxu0 0.0
        %1534 = vmatprep.subr.mxu0 0.0
        %1535 = vmatpush1.msra.mxu0 0.0
        %1536 = vmatprep.subr.mxu0 0.0
        %1537 = vmatpush1.msra.mxu0 0.0
        %1538 = vmatprep.subr.mxu0 0.0
        %1539 = vmatpush1.msra.mxu0 0.0
        %1540 = vmatprep.subr.mxu0 0.0
        %1541 = vmatpush1.msra.mxu0 0.0
        %1542 = vmatprep.subr.mxu0 0.0
        %1543 = vmatpush1.msra.mxu0 0.0
        %1544 = vmatprep.subr.mxu0 0.0
        %1545 = vmatpush1.msra.mxu0 0.0
        %1546 = vmatprep.subr.mxu0 0.0
        %1547 = vmatpush1.msra.mxu0 0.0
        %1548 = vmatprep.subr.mxu0 0.0
        %1549 = vmatpush1.msra.mxu0 0.0
        %1550 = vmatprep.subr.mxu0 0.0
        %1551 = vmatpush1.msra.mxu0 0.0
        %1552 = vmatprep.subr.mxu0 0.0
        %1553 = vmatpush1.msra.mxu0 0.0
        %1554 = vmatprep.subr.mxu0 0.0
        %1555 = vmatpush1.msra.mxu0 0.0
        %1556 = vmatprep.subr.mxu0 0.0
        %1557 = vmatpush1.msra.mxu0 0.0
        %1558 = vmatprep.subr.mxu0 0.0
        %1559 = vmatpush1.msra.mxu0 0.0
        %1560 = vmatprep.subr.mxu0 0.0
        %1561 = vmatpush1.msra.mxu0 0.0
        %1562 = vmatprep.subr.mxu0 0.0
        %1563 = vmatpush1.msra.mxu0 0.0
        %1564 = vmatprep.mubr.f32.mxu0 0.0
        %1565 = vmatmul.mubr.f32.gmra.mrb[0].mxu0 %v456
        %v1566 = vpop.f32.mrb[0].mxu0
        %v1567 = vadd.f32 0.0, %v1566
        %v1568 = vpop.f32.mrb[0].mxu0
        %v1569 = vadd.f32 0.0, %v1568
        %1570 = vmatprep.mubr.f32.mxu0 0.0
        %1571 = vmatmul.mubr.f32.gmra.mrb[0].mxu0 %v457
        %v1572 = vpop.f32.mrb[0].mxu0
        %v1573 = vadd.f32 0.0, %v1572
        %v1574 = vpop.f32.mrb[0].mxu0
        %v1575 = vadd.f32 0.0, %v1574
        %1576 = vmatprep.mubr.f32.mxu0 0.0
        %1577 = vmatmul.mubr.f32.gmra.mrb[0].mxu0 %v458
        %v1578 = vpop.f32.mrb[0].mxu0
        %v1579 = vadd.f32 0.0, %v1578
        %v1580 = vpop.f32.mrb[0].mxu0
        %v1581 = vadd.f32 0.0, %v1580
        %1582 = vmatprep.mubr.f32.mxu0 0.0
        %1583 = vmatmul.mubr.f32.gmra.mrb[0].mxu0 %v459
        %v1584 = vpop.f32.mrb[0].mxu0
        %v1585 = vadd.f32 0.0, %v1584
        %v1586 = vpop.f32.mrb[0].mxu0
        %v1587 = vadd.f32 0.0, %v1586
        %1588 = vmatprep.mubr.f32.mxu0 0.0
        %1589 = vmatmul.mubr.f32.gmra.mrb[0].mxu0 %v460
        %v1590 = vpop.f32.mrb[0].mxu0
        %v1591 = vadd.f32 0.0, %v1590
        %v1592 = vpop.f32.mrb[0].mxu0
        %v1593 = vadd.f32 0.0, %v1592
        %1594 = vmatprep.mubr.f32.mxu0 0.0
        %1595 = vmatmul.mubr.f32.gmra.mrb[0].mxu0 %v461
        %v1596 = vpop.f32.mrb[0].mxu0
        %v1597 = vadd.f32 0.0, %v1596
        %v1598 = vpop.f32.mrb[0].mxu0
        %v1599 = vadd.f32 0.0, %v1598
        %1600 = vmatprep.mubr.f32.mxu0 0.0
        %1601 = vmatmul.mubr.f32.gmra.mrb[0].mxu0 %v462
        %v1602 = vpop.f32.mrb[0].mxu0
        %v1603 = vadd.f32 0.0, %v1602
        %v1604 = vpop.f32.mrb[0].mxu0
        %v1605 = vadd.f32 0.0, %v1604
        %1606 = vmatprep.mubr.f32.mxu0 0.0
        %1607 = vmatmul.mubr.f32.gmra.mrb[0].mxu0 %v463
        %v1608 = vpop.f32.mrb[0].mxu0
        %v1609 = vadd.f32 0.0, %v1608
        %v1610 = vpop.f32.mrb[0].mxu0
        %v1611 = vadd.f32 0.0, %v1610
        %1612 = vmatprep.mubr.f32.mxu0 0.0
        %1613 = vmatmul.mubr.f32.gmra.mrb[0].mxu0 %v464
        %v1614 = vpop.f32.mrb[0].mxu0
        %v1615 = vadd.f32 0.0, %v1614
        %v1616 = vpop.f32.mrb[0].mxu0
        %v1617 = vadd.f32 0.0, %v1616
        %1618 = vmatprep.mubr.f32.mxu0 0.0
        %1619 = vmatmul.mubr.f32.gmra.mrb[0].mxu0 %v465
        %v1620 = vpop.f32.mrb[0].mxu0
        %v1621 = vadd.f32 0.0, %v1620
        %v1622 = vpop.f32.mrb[0].mxu0
        %v1623 = vadd.f32 0.0, %v1622
        %1624 = vmatprep.mubr.f32.mxu0 0.0
        %1625 = vmatmul.mubr.f32.gmra.mrb[0].mxu0 %v466
        %v1626 = vpop.f32.mrb[0].mxu0
        %v1627 = vadd.f32 0.0, %v1626
        %v1628 = vpop.f32.mrb[0].mxu0
        %v1629 = vadd.f32 0.0, %v1628
        %1630 = vmatprep.mubr.f32.mxu0 0.0
        %1631 = vmatmul.mubr.f32.gmra.mrb[0].mxu0 %v467
        %v1632 = vpop.f32.mrb[0].mxu0
        %v1633 = vadd.f32 0.0, %v1632
        %v1634 = vpop.f32.mrb[0].mxu0
        %v1635 = vadd.f32 0.0, %v1634
        %1636 = vmatprep.mubr.f32.mxu0 0.0
        %1637 = vmatmul.mubr.f32.gmra.mrb[0].mxu0 %v468
        %v1638 = vpop.f32.mrb[0].mxu0
        %v1639 = vadd.f32 0.0, %v1638
        %v1640 = vpop.f32.mrb[0].mxu0
        %v1641 = vadd.f32 0.0, %v1640
        %1642 = vmatprep.mubr.f32.mxu0 0.0
        %1643 = vmatmul.mubr.f32.gmra.mrb[0].mxu0 %v469
        %v1644 = vpop.f32.mrb[0].mxu0
        %v1645 = vadd.f32 0.0, %v1644
        %v1646 = vpop.f32.mrb[0].mxu0
        %v1647 = vadd.f32 0.0, %v1646
        %1648 = vmatprep.mubr.f32.mxu0 0.0
        %1649 = vmatmul.mubr.f32.gmra.mrb[0].mxu0 %v470
        %v1650 = vpop.f32.mrb[0].mxu0
        %v1651 = vadd.f32 0.0, %v1650
        %v1652 = vpop.f32.mrb[0].mxu0
        %v1653 = vadd.f32 0.0, %v1652
        %1654 = vmatprep.mubr.f32.mxu0 0.0
        %1655 = vmatmul.mubr.f32.gmra.mrb[0].mxu0 %v471
        %v1656 = vpop.f32.mrb[0].mxu0
        %v1657 = vadd.f32 0.0, %v1656
        %v1658 = vpop.f32.mrb[0].mxu0
        %v1659 = vadd.f32 0.0, %v1658
        %1660 = vdwg.mxu0
        %v1661 = vmax.f32 %v1406, %v1408
        %v1662 = vmax.f32 %v1661, %v1567
        %v1663 = vmax.f32 %v1662, %v1569
        %1664 = vmax.xlane.f32.xlu0 %v1663
        %v1665 = vpop.xlane.xlu0 %1664
        %v1666 = vmax.f32 %v1412, %v1414
        %v1667 = vmax.f32 %v1666, %v1573
        %v1668 = vmax.f32 %v1667, %v1575
        %1669 = vmax.xlane.f32.xlu0 %v1668
        %v1670 = vpop.xlane.xlu0 %1669
        %v1671 = vmax.f32 %v1418, %v1420
        %v1672 = vmax.f32 %v1671, %v1579
        %v1673 = vmax.f32 %v1672, %v1581
        %1674 = vmax.xlane.f32.xlu0 %v1673
        %v1675 = vpop.xlane.xlu0 %1674
        %v1676 = vmax.f32 %v1424, %v1426
        %v1677 = vmax.f32 %v1676, %v1585
        %v1678 = vmax.f32 %v1677, %v1587
        %1679 = vmax.xlane.f32.xlu0 %v1678
        %v1680 = vpop.xlane.xlu0 %1679
        %v1681 = vmax.f32 %v1430, %v1432
        %v1682 = vmax.f32 %v1681, %v1591
        %v1683 = vmax.f32 %v1682, %v1593
        %1684 = vmax.xlane.f32.xlu0 %v1683
        %v1685 = vpop.xlane.xlu0 %1684
        %v1686 = vmax.f32 %v1436, %v1438
        %v1687 = vmax.f32 %v1686, %v1597
        %v1688 = vmax.f32 %v1687, %v1599
        %1689 = vmax.xlane.f32.xlu0 %v1688
        %v1690 = vpop.xlane.xlu0 %1689
        %v1691 = vmax.f32 %v1442, %v1444
        %v1692 = vmax.f32 %v1691, %v1603
        %v1693 = vmax.f32 %v1692, %v1605
        %1694 = vmax.xlane.f32.xlu0 %v1693
        %v1695 = vpop.xlane.xlu0 %1694
        %v1696 = vmax.f32 %v1448, %v1450
        %v1697 = vmax.f32 %v1696, %v1609
        %v1698 = vmax.f32 %v1697, %v1611
        %1699 = vmax.xlane.f32.xlu0 %v1698
        %v1700 = vpop.xlane.xlu0 %1699
        %v1701 = vmax.f32 %v1454, %v1456
        %v1702 = vmax.f32 %v1701, %v1615
        %v1703 = vmax.f32 %v1702, %v1617
        %1704 = vmax.xlane.f32.xlu0 %v1703
        %v1705 = vpop.xlane.xlu0 %1704
        %v1706 = vmax.f32 %v1460, %v1462
        %v1707 = vmax.f32 %v1706, %v1621
        %v1708 = vmax.f32 %v1707, %v1623
        %1709 = vmax.xlane.f32.xlu0 %v1708
        %v1710 = vpop.xlane.xlu0 %1709
        %v1711 = vmax.f32 %v1466, %v1468
        %v1712 = vmax.f32 %v1711, %v1627
        %v1713 = vmax.f32 %v1712, %v1629
        %1714 = vmax.xlane.f32.xlu0 %v1713
        %v1715 = vpop.xlane.xlu0 %1714
        %v1716 = vmax.f32 %v1472, %v1474
        %v1717 = vmax.f32 %v1716, %v1633
        %v1718 = vmax.f32 %v1717, %v1635
        %1719 = vmax.xlane.f32.xlu0 %v1718
        %v1720 = vpop.xlane.xlu0 %1719
        %v1721 = vmax.f32 %v1478, %v1480
        %v1722 = vmax.f32 %v1721, %v1639
        %v1723 = vmax.f32 %v1722, %v1641
        %1724 = vmax.xlane.f32.xlu0 %v1723
        %v1725 = vpop.xlane.xlu0 %1724
        %v1726 = vmax.f32 %v1484, %v1486
        %v1727 = vmax.f32 %v1726, %v1645
        %v1728 = vmax.f32 %v1727, %v1647
        %1729 = vmax.xlane.f32.xlu0 %v1728
        %v1730 = vpop.xlane.xlu0 %1729
        %v1731 = vmax.f32 %v1490, %v1492
        %v1732 = vmax.f32 %v1731, %v1651
        %v1733 = vmax.f32 %v1732, %v1653
        %1734 = vmax.xlane.f32.xlu0 %v1733
        %v1735 = vpop.xlane.xlu0 %1734
        %v1736 = vmax.f32 %v1496, %v1498
        %v1737 = vmax.f32 %v1736, %v1657
        %v1738 = vmax.f32 %v1737, %v1659
        %1739 = vmax.xlane.f32.xlu0 %v1738
        %v1740 = vpop.xlane.xlu0 %1739
        %v1741 = vsub.f32 %v1406, %v1665
        %v1742 = vsub.f32 %v1408, %v1665
        %v1743 = vsub.f32 %v1567, %v1665
        %v1744 = vsub.f32 %v1569, %v1665
        %v1745 = vsub.f32 %v1412, %v1670
        %v1746 = vsub.f32 %v1414, %v1670
        %v1747 = vsub.f32 %v1573, %v1670
        %v1748 = vsub.f32 %v1575, %v1670
        %v1749 = vsub.f32 %v1418, %v1675
        %v1750 = vsub.f32 %v1420, %v1675
        %v1751 = vsub.f32 %v1579, %v1675
        %v1752 = vsub.f32 %v1581, %v1675
        %v1753 = vsub.f32 %v1424, %v1680
        %v1754 = vsub.f32 %v1426, %v1680
        %v1755 = vsub.f32 %v1585, %v1680
        %v1756 = vsub.f32 %v1587, %v1680
        %v1757 = vsub.f32 %v1430, %v1685
        %v1758 = vsub.f32 %v1432, %v1685
        %v1759 = vsub.f32 %v1591, %v1685
        %v1760 = vsub.f32 %v1593, %v1685
        %v1761 = vsub.f32 %v1436, %v1690
        %v1762 = vsub.f32 %v1438, %v1690
        %v1763 = vsub.f32 %v1597, %v1690
        %v1764 = vsub.f32 %v1599, %v1690
        %v1765 = vsub.f32 %v1442, %v1695
        %v1766 = vsub.f32 %v1444, %v1695
        %v1767 = vsub.f32 %v1603, %v1695
        %v1768 = vsub.f32 %v1605, %v1695
        %v1769 = vsub.f32 %v1448, %v1700
        %v1770 = vsub.f32 %v1450, %v1700
        %v1771 = vsub.f32 %v1609, %v1700
        %v1772 = vsub.f32 %v1611, %v1700
        %v1773 = vsub.f32 %v1454, %v1705
        %v1774 = vsub.f32 %v1456, %v1705
        %v1775 = vsub.f32 %v1615, %v1705
        %v1776 = vsub.f32 %v1617, %v1705
        %v1777 = vsub.f32 %v1460, %v1710
        %v1778 = vsub.f32 %v1462, %v1710
        %v1779 = vsub.f32 %v1621, %v1710
        %v1780 = vsub.f32 %v1623, %v1710
        %v1781 = vsub.f32 %v1466, %v1715
        %v1782 = vsub.f32 %v1468, %v1715
        %v1783 = vsub.f32 %v1627, %v1715
        %v1784 = vsub.f32 %v1629, %v1715
        %v1785 = vsub.f32 %v1472, %v1720
        %v1786 = vsub.f32 %v1474, %v1720
        %v1787 = vsub.f32 %v1633, %v1720
        %v1788 = vsub.f32 %v1635, %v1720
        %v1789 = vsub.f32 %v1478, %v1725
        %v1790 = vsub.f32 %v1480, %v1725
        %v1791 = vsub.f32 %v1639, %v1725
        %v1792 = vsub.f32 %v1641, %v1725
        %v1793 = vsub.f32 %v1484, %v1730
        %v1794 = vsub.f32 %v1486, %v1730
        %v1795 = vsub.f32 %v1645, %v1730
        %v1796 = vsub.f32 %v1647, %v1730
        %v1797 = vsub.f32 %v1490, %v1735
        %v1798 = vsub.f32 %v1492, %v1735
        %v1799 = vsub.f32 %v1651, %v1735
        %v1800 = vsub.f32 %v1653, %v1735
        %v1801 = vsub.f32 %v1496, %v1740
        %v1802 = vsub.f32 %v1498, %v1740
        %v1803 = vsub.f32 %v1657, %v1740
        %v1804 = vsub.f32 %v1659, %v1740
        %v1805 = vmul.f32 %v1741, 1.442695
        %v1806 = vpow.pop %v1805
        %v1807 = vmul.f32 %v1742, 1.442695
        %v1808 = vpow.pop %v1807
        %v1809 = vmul.f32 %v1743, 1.442695
        %v1810 = vpow.pop %v1809
        %v1811 = vmul.f32 %v1744, 1.442695
        %v1812 = vpow.pop %v1811
        %v1813 = vmul.f32 %v1745, 1.442695
        %v1814 = vpow.pop %v1813
        %v1815 = vmul.f32 %v1746, 1.442695
        %v1816 = vpow.pop %v1815
        %v1817 = vmul.f32 %v1747, 1.442695
        %v1818 = vpow.pop %v1817
        %v1819 = vmul.f32 %v1748, 1.442695
        %v1820 = vpow.pop %v1819
        %v1821 = vmul.f32 %v1749, 1.442695
        %v1822 = vpow.pop %v1821
        %v1823 = vmul.f32 %v1750, 1.442695
        %v1824 = vpow.pop %v1823
        %v1825 = vmul.f32 %v1751, 1.442695
        %v1826 = vpow.pop %v1825
        %v1827 = vmul.f32 %v1752, 1.442695
        %v1828 = vpow.pop %v1827
        %v1829 = vmul.f32 %v1753, 1.442695
        %v1830 = vpow.pop %v1829
        %v1831 = vmul.f32 %v1754, 1.442695
        %v1832 = vpow.pop %v1831
        %v1833 = vmul.f32 %v1755, 1.442695
        %v1834 = vpow.pop %v1833
        %v1835 = vmul.f32 %v1756, 1.442695
        %v1836 = vpow.pop %v1835
        %v1837 = vmul.f32 %v1757, 1.442695
        %v1838 = vpow.pop %v1837
        %v1839 = vmul.f32 %v1758, 1.442695
        %v1840 = vpow.pop %v1839
        %v1841 = vmul.f32 %v1759, 1.442695
        %v1842 = vpow.pop %v1841
        %v1843 = vmul.f32 %v1760, 1.442695
        %v1844 = vpow.pop %v1843
        %v1845 = vmul.f32 %v1761, 1.442695
        %v1846 = vpow.pop %v1845
        %v1847 = vmul.f32 %v1762, 1.442695
        %v1848 = vpow.pop %v1847
        %v1849 = vmul.f32 %v1763, 1.442695
        %v1850 = vpow.pop %v1849
        %v1851 = vmul.f32 %v1764, 1.442695
        %v1852 = vpow.pop %v1851
        %v1853 = vmul.f32 %v1765, 1.442695
        %v1854 = vpow.pop %v1853
        %v1855 = vmul.f32 %v1766, 1.442695
        %v1856 = vpow.pop %v1855
        %v1857 = vmul.f32 %v1767, 1.442695
        %v1858 = vpow.pop %v1857
        %v1859 = vmul.f32 %v1768, 1.442695
        %v1860 = vpow.pop %v1859
        %v1861 = vmul.f32 %v1769, 1.442695
        %v1862 = vpow.pop %v1861
        %v1863 = vmul.f32 %v1770, 1.442695
        %v1864 = vpow.pop %v1863
        %v1865 = vmul.f32 %v1771, 1.442695
        %v1866 = vpow.pop %v1865
        %v1867 = vmul.f32 %v1772, 1.442695
        %v1868 = vpow.pop %v1867
        %v1869 = vmul.f32 %v1773, 1.442695
        %v1870 = vpow.pop %v1869
        %v1871 = vmul.f32 %v1774, 1.442695
        %v1872 = vpow.pop %v1871
        %v1873 = vmul.f32 %v1775, 1.442695
        %v1874 = vpow.pop %v1873
        %v1875 = vmul.f32 %v1776, 1.442695
        %v1876 = vpow.pop %v1875
        %v1877 = vmul.f32 %v1777, 1.442695
        %v1878 = vpow.pop %v1877
        %v1879 = vmul.f32 %v1778, 1.442695
        %v1880 = vpow.pop %v1879
        %v1881 = vmul.f32 %v1779, 1.442695
        %v1882 = vpow.pop %v1881
        %v1883 = vmul.f32 %v1780, 1.442695
        %v1884 = vpow.pop %v1883
        %v1885 = vmul.f32 %v1781, 1.442695
        %v1886 = vpow.pop %v1885
        %v1887 = vmul.f32 %v1782, 1.442695
        %v1888 = vpow.pop %v1887
        %v1889 = vmul.f32 %v1783, 1.442695
        %v1890 = vpow.pop %v1889
        %v1891 = vmul.f32 %v1784, 1.442695
        %v1892 = vpow.pop %v1891
        %v1893 = vmul.f32 %v1785, 1.442695
        %v1894 = vpow.pop %v1893
        %v1895 = vmul.f32 %v1786, 1.442695
        %v1896 = vpow.pop %v1895
        %v1897 = vmul.f32 %v1787, 1.442695
        %v1898 = vpow.pop %v1897
        %v1899 = vmul.f32 %v1788, 1.442695
        %v1900 = vpow.pop %v1899
        %v1901 = vmul.f32 %v1789, 1.442695
        %v1902 = vpow.pop %v1901
        %v1903 = vmul.f32 %v1790, 1.442695
        %v1904 = vpow.pop %v1903
        %v1905 = vmul.f32 %v1791, 1.442695
        %v1906 = vpow.pop %v1905
        %v1907 = vmul.f32 %v1792, 1.442695
        %v1908 = vpow.pop %v1907
        %v1909 = vmul.f32 %v1793, 1.442695
        %v1910 = vpow.pop %v1909
        %v1911 = vmul.f32 %v1794, 1.442695
        %v1912 = vpow.pop %v1911
        %v1913 = vmul.f32 %v1795, 1.442695
        %v1914 = vpow.pop %v1913
        %v1915 = vmul.f32 %v1796, 1.442695
        %v1916 = vpow.pop %v1915
        %v1917 = vmul.f32 %v1797, 1.442695
        %v1918 = vpow.pop %v1917
        %v1919 = vmul.f32 %v1798, 1.442695
        %v1920 = vpow.pop %v1919
        %v1921 = vmul.f32 %v1799, 1.442695
        %v1922 = vpow.pop %v1921
        %v1923 = vmul.f32 %v1800, 1.442695
        %v1924 = vpow.pop %v1923
        %v1925 = vmul.f32 %v1801, 1.442695
        %v1926 = vpow.pop %v1925
        %v1927 = vmul.f32 %v1802, 1.442695
        %v1928 = vpow.pop %v1927
        %v1929 = vmul.f32 %v1803, 1.442695
        %v1930 = vpow.pop %v1929
        %v1931 = vmul.f32 %v1804, 1.442695
        %v1932 = vpow.pop %v1931
        %v1933 = vadd.f32 %v1806, %v1808
        %v1934 = vadd.f32 %v1933, %v1810
        %v1935 = vadd.f32 %v1934, %v1812
        %1936 = vadd.xlane.f32.xlu0 %v1935
        %v1937 = vpop.xlane.xlu0 %1936
        %v1938 = vadd.f32 %v1814, %v1816
        %v1939 = vadd.f32 %v1938, %v1818
        %v1940 = vadd.f32 %v1939, %v1820
        %1941 = vadd.xlane.f32.xlu0 %v1940
        %v1942 = vpop.xlane.xlu0 %1941
        %v1943 = vadd.f32 %v1822, %v1824
        %v1944 = vadd.f32 %v1943, %v1826
        %v1945 = vadd.f32 %v1944, %v1828
        %1946 = vadd.xlane.f32.xlu0 %v1945
        %v1947 = vpop.xlane.xlu0 %1946
        %v1948 = vadd.f32 %v1830, %v1832
        %v1949 = vadd.f32 %v1948, %v1834
        %v1950 = vadd.f32 %v1949, %v1836
        %1951 = vadd.xlane.f32.xlu0 %v1950
        %v1952 = vpop.xlane.xlu0 %1951
        %v1953 = vadd.f32 %v1838, %v1840
        %v1954 = vadd.f32 %v1953, %v1842
        %v1955 = vadd.f32 %v1954, %v1844
        %1956 = vadd.xlane.f32.xlu0 %v1955
        %v1957 = vpop.xlane.xlu0 %1956
        %v1958 = vadd.f32 %v1846, %v1848
        %v1959 = vadd.f32 %v1958, %v1850
        %v1960 = vadd.f32 %v1959, %v1852
        %1961 = vadd.xlane.f32.xlu0 %v1960
        %v1962 = vpop.xlane.xlu0 %1961
        %v1963 = vadd.f32 %v1854, %v1856
        %v1964 = vadd.f32 %v1963, %v1858
        %v1965 = vadd.f32 %v1964, %v1860
        %1966 = vadd.xlane.f32.xlu0 %v1965
        %v1967 = vpop.xlane.xlu0 %1966
        %v1968 = vadd.f32 %v1862, %v1864
        %v1969 = vadd.f32 %v1968, %v1866
        %v1970 = vadd.f32 %v1969, %v1868
        %1971 = vadd.xlane.f32.xlu0 %v1970
        %v1972 = vpop.xlane.xlu0 %1971
        %v1973 = vadd.f32 %v1870, %v1872
        %v1974 = vadd.f32 %v1973, %v1874
        %v1975 = vadd.f32 %v1974, %v1876
        %1976 = vadd.xlane.f32.xlu0 %v1975
        %v1977 = vpop.xlane.xlu0 %1976
        %v1978 = vadd.f32 %v1878, %v1880
        %v1979 = vadd.f32 %v1978, %v1882
        %v1980 = vadd.f32 %v1979, %v1884
        %1981 = vadd.xlane.f32.xlu0 %v1980
        %v1982 = vpop.xlane.xlu0 %1981
        %v1983 = vadd.f32 %v1886, %v1888
        %v1984 = vadd.f32 %v1983, %v1890
        %v1985 = vadd.f32 %v1984, %v1892
        %1986 = vadd.xlane.f32.xlu0 %v1985
        %v1987 = vpop.xlane.xlu0 %1986
        %v1988 = vadd.f32 %v1894, %v1896
        %v1989 = vadd.f32 %v1988, %v1898
        %v1990 = vadd.f32 %v1989, %v1900
        %1991 = vadd.xlane.f32.xlu0 %v1990
        %v1992 = vpop.xlane.xlu0 %1991
        %v1993 = vadd.f32 %v1902, %v1904
        %v1994 = vadd.f32 %v1993, %v1906
        %v1995 = vadd.f32 %v1994, %v1908
        %1996 = vadd.xlane.f32.xlu0 %v1995
        %v1997 = vpop.xlane.xlu0 %1996
        %v1998 = vadd.f32 %v1910, %v1912
        %v1999 = vadd.f32 %v1998, %v1914
        %v2000 = vadd.f32 %v1999, %v1916
        %2001 = vadd.xlane.f32.xlu0 %v2000
        %v2002 = vpop.xlane.xlu0 %2001
        %v2003 = vadd.f32 %v1918, %v1920
        %v2004 = vadd.f32 %v2003, %v1922
        %v2005 = vadd.f32 %v2004, %v1924
        %2006 = vadd.xlane.f32.xlu0 %v2005
        %v2007 = vpop.xlane.xlu0 %2006
        %v2008 = vadd.f32 %v1926, %v1928
        %v2009 = vadd.f32 %v2008, %v1930
        %v2010 = vadd.f32 %v2009, %v1932
        %2011 = vadd.xlane.f32.xlu0 %v2010
        %v2012 = vpop.xlane.xlu0 %2011
        %2013 = vmatprep.subr.mxu0 0.0
        %2014 = vmatpush1.msra.mxu0 %v1021
        %2015 = vmatprep.subr.mxu0 0.0
        %2016 = vmatpush1.msra.mxu0 %v1026
        %2017 = vmatprep.subr.mxu0 0.0
        %2018 = vmatpush1.msra.mxu0 %v1031
        %2019 = vmatprep.subr.mxu0 0.0
        %2020 = vmatpush1.msra.mxu0 %v1036
        %2021 = vmatprep.subr.mxu0 0.0
        %2022 = vmatpush1.msra.mxu0 %v1041
        %2023 = vmatprep.subr.mxu0 0.0
        %2024 = vmatpush1.msra.mxu0 %v1046
        %2025 = vmatprep.subr.mxu0 0.0
        %2026 = vmatpush1.msra.mxu0 %v1051
        %2027 = vmatprep.subr.mxu0 0.0
        %2028 = vmatpush1.msra.mxu0 %v1056
        %2029 = vmatprep.subr.mxu0 0.0
        %2030 = vmatpush1.msra.mxu0 %v1061
        %2031 = vmatprep.subr.mxu0 0.0
        %2032 = vmatpush1.msra.mxu0 %v1066
        %2033 = vmatprep.subr.mxu0 0.0
        %2034 = vmatpush1.msra.mxu0 %v1071
        %2035 = vmatprep.subr.mxu0 0.0
        %2036 = vmatpush1.msra.mxu0 %v1076
        %2037 = vmatprep.subr.mxu0 0.0
        %2038 = vmatpush1.msra.mxu0 %v1081
        %2039 = vmatprep.subr.mxu0 0.0
        %2040 = vmatpush1.msra.mxu0 %v1086
        %2041 = vmatprep.subr.mxu0 0.0
        %2042 = vmatpush1.msra.mxu0 %v1091
        %2043 = vmatprep.subr.mxu0 0.0
        %2044 = vmatpush1.msra.mxu0 %v1096
        %2045 = vmatprep.subr.mxu0 0.0
        %2046 = vmatpush1.msra.mxu0 %v1101
        %2047 = vmatprep.subr.mxu0 0.0
        %2048 = vmatpush1.msra.mxu0 %v1106
        %2049 = vmatprep.subr.mxu0 0.0
        %2050 = vmatpush1.msra.mxu0 %v1111
        %2051 = vmatprep.subr.mxu0 0.0
        %2052 = vmatpush1.msra.mxu0 %v1116
        %2053 = vmatprep.subr.mxu0 0.0
        %2054 = vmatpush1.msra.mxu0 %v1121
        %2055 = vmatprep.subr.mxu0 0.0
        %2056 = vmatpush1.msra.mxu0 %v1126
        %2057 = vmatprep.subr.mxu0 0.0
        %2058 = vmatpush1.msra.mxu0 %v1131
        %2059 = vmatprep.subr.mxu0 0.0
        %2060 = vmatpush1.msra.mxu0 %v1136
        %2061 = vmatprep.subr.mxu0 0.0
        %2062 = vmatpush1.msra.mxu0 %v1141
        %2063 = vmatprep.subr.mxu0 0.0
        %2064 = vmatpush1.msra.mxu0 %v1146
        %2065 = vmatprep.subr.mxu0 0.0
        %2066 = vmatpush1.msra.mxu0 %v1151
        %2067 = vmatprep.subr.mxu0 0.0
        %2068 = vmatpush1.msra.mxu0 %v1156
        %2069 = vmatprep.subr.mxu0 0.0
        %2070 = vmatpush1.msra.mxu0 %v1161
        %2071 = vmatprep.subr.mxu0 0.0
        %2072 = vmatpush1.msra.mxu0 %v1166
        %2073 = vmatprep.subr.mxu0 0.0
        %2074 = vmatpush1.msra.mxu0 %v1171
        %2075 = vmatprep.subr.mxu0 0.0
        %2076 = vmatpush1.msra.mxu0 %v1176
        %2077 = vmatprep.mubr.f32.mxu0 %v1808
        %2078 = vmatmul.mubr.f32.gmra.mrb[0].mxu0 %v1806
        %v2079 = vpop.f32.mrb[0].mxu0
        %v2080 = vadd.f32 0.0, %v2079
        %v2081 = vpop.f32.mrb[0].mxu0
        %2082 = vmatprep.mubr.f32.mxu0 %v1816
        %2083 = vmatmul.mubr.f32.gmra.mrb[0].mxu0 %v1814
        %v2084 = vpop.f32.mrb[0].mxu0
        %v2085 = vadd.f32 0.0, %v2084
        %v2086 = vpop.f32.mrb[0].mxu0
        %2087 = vmatprep.mubr.f32.mxu0 %v1824
        %2088 = vmatmul.mubr.f32.gmra.mrb[0].mxu0 %v1822
        %v2089 = vpop.f32.mrb[0].mxu0
        %v2090 = vadd.f32 0.0, %v2089
        %v2091 = vpop.f32.mrb[0].mxu0
        %2092 = vmatprep.mubr.f32.mxu0 %v1832
        %2093 = vmatmul.mubr.f32.gmra.mrb[0].mxu0 %v1830
        %v2094 = vpop.f32.mrb[0].mxu0
        %v2095 = vadd.f32 0.0, %v2094
        %v2096 = vpop.f32.mrb[0].mxu0
        %2097 = vmatprep.mubr.f32.mxu0 %v1840
        %2098 = vmatmul.mubr.f32.gmra.mrb[0].mxu0 %v1838
        %v2099 = vpop.f32.mrb[0].mxu0
        %v2100 = vadd.f32 0.0, %v2099
        %v2101 = vpop.f32.mrb[0].mxu0
        %2102 = vmatprep.mubr.f32.mxu0 %v1848
        %2103 = vmatmul.mubr.f32.gmra.mrb[0].mxu0 %v1846
        %v2104 = vpop.f32.mrb[0].mxu0
        %v2105 = vadd.f32 0.0, %v2104
        %v2106 = vpop.f32.mrb[0].mxu0
        %2107 = vmatprep.mubr.f32.mxu0 %v1856
        %2108 = vmatmul.mubr.f32.gmra.mrb[0].mxu0 %v1854
        %v2109 = vpop.f32.mrb[0].mxu0
        %v2110 = vadd.f32 0.0, %v2109
        %v2111 = vpop.f32.mrb[0].mxu0
        %2112 = vmatprep.mubr.f32.mxu0 %v1864
        %2113 = vmatmul.mubr.f32.gmra.mrb[0].mxu0 %v1862
        %v2114 = vpop.f32.mrb[0].mxu0
        %v2115 = vadd.f32 0.0, %v2114
        %v2116 = vpop.f32.mrb[0].mxu0
        %2117 = vmatprep.mubr.f32.mxu0 %v1872
        %2118 = vmatmul.mubr.f32.gmra.mrb[0].mxu0 %v1870
        %v2119 = vpop.f32.mrb[0].mxu0
        %v2120 = vadd.f32 0.0, %v2119
        %v2121 = vpop.f32.mrb[0].mxu0
        %2122 = vmatprep.mubr.f32.mxu0 %v1880
        %2123 = vmatmul.mubr.f32.gmra.mrb[0].mxu0 %v1878
        %v2124 = vpop.f32.mrb[0].mxu0
        %v2125 = vadd.f32 0.0, %v2124
        %v2126 = vpop.f32.mrb[0].mxu0
        %2127 = vmatprep.mubr.f32.mxu0 %v1888
        %2128 = vmatmul.mubr.f32.gmra.mrb[0].mxu0 %v1886
        %v2129 = vpop.f32.mrb[0].mxu0
        %v2130 = vadd.f32 0.0, %v2129
        %v2131 = vpop.f32.mrb[0].mxu0
        %2132 = vmatprep.mubr.f32.mxu0 %v1896
        %2133 = vmatmul.mubr.f32.gmra.mrb[0].mxu0 %v1894
        %v2134 = vpop.f32.mrb[0].mxu0
        %v2135 = vadd.f32 0.0, %v2134
        %v2136 = vpop.f32.mrb[0].mxu0
        %2137 = vmatprep.mubr.f32.mxu0 %v1904
        %2138 = vmatmul.mubr.f32.gmra.mrb[0].mxu0 %v1902
        %v2139 = vpop.f32.mrb[0].mxu0
        %v2140 = vadd.f32 0.0, %v2139
        %v2141 = vpop.f32.mrb[0].mxu0
        %2142 = vmatprep.mubr.f32.mxu0 %v1912
        %2143 = vmatmul.mubr.f32.gmra.mrb[0].mxu0 %v1910
        %v2144 = vpop.f32.mrb[0].mxu0
        %v2145 = vadd.f32 0.0, %v2144
        %v2146 = vpop.f32.mrb[0].mxu0
        %2147 = vmatprep.mubr.f32.mxu0 %v1920
        %2148 = vmatmul.mubr.f32.gmra.mrb[0].mxu0 %v1918
        %v2149 = vpop.f32.mrb[0].mxu0
        %v2150 = vadd.f32 0.0, %v2149
        %v2151 = vpop.f32.mrb[0].mxu0
        %2152 = vmatprep.mubr.f32.mxu0 %v1928
        %2153 = vmatmul.mubr.f32.gmra.mrb[0].mxu0 %v1926
        %v2154 = vpop.f32.mrb[0].mxu0
        %v2155 = vadd.f32 0.0, %v2154
        %v2156 = vpop.f32.mrb[0].mxu0
        %2157 = vdwg.mxu0
        %2158 = vmatprep.subr.mxu0 0.0
        %2159 = vmatpush1.msra.mxu0 %v1181
        %2160 = vmatprep.subr.mxu0 0.0
        %2161 = vmatpush1.msra.mxu0 %v1186
        %2162 = vmatprep.subr.mxu0 0.0
        %2163 = vmatpush1.msra.mxu0 %v1191
        %2164 = vmatprep.subr.mxu0 0.0
        %2165 = vmatpush1.msra.mxu0 %v1196
        %2166 = vmatprep.subr.mxu0 0.0
        %2167 = vmatpush1.msra.mxu0 %v1201
        %2168 = vmatprep.subr.mxu0 0.0
        %2169 = vmatpush1.msra.mxu0 %v1206
        %2170 = vmatprep.subr.mxu0 0.0
        %2171 = vmatpush1.msra.mxu0 %v1211
        %2172 = vmatprep.subr.mxu0 0.0
        %2173 = vmatpush1.msra.mxu0 %v1216
        %2174 = vmatprep.subr.mxu0 0.0
        %2175 = vmatpush1.msra.mxu0 %v1221
        %2176 = vmatprep.subr.mxu0 0.0
        %2177 = vmatpush1.msra.mxu0 %v1226
        %2178 = vmatprep.subr.mxu0 0.0
        %2179 = vmatpush1.msra.mxu0 %v1231
        %2180 = vmatprep.subr.mxu0 0.0
        %2181 = vmatpush1.msra.mxu0 %v1236
        %2182 = vmatprep.subr.mxu0 0.0
        %2183 = vmatpush1.msra.mxu0 %v1241
        %2184 = vmatprep.subr.mxu0 0.0
        %2185 = vmatpush1.msra.mxu0 %v1246
        %2186 = vmatprep.subr.mxu0 0.0
        %2187 = vmatpush1.msra.mxu0 %v1251
        %2188 = vmatprep.subr.mxu0 0.0
        %2189 = vmatpush1.msra.mxu0 %v1256
        %2190 = vmatprep.subr.mxu0 0.0
        %2191 = vmatpush1.msra.mxu0 %v1261
        %2192 = vmatprep.subr.mxu0 0.0
        %2193 = vmatpush1.msra.mxu0 %v1266
        %2194 = vmatprep.subr.mxu0 0.0
        %2195 = vmatpush1.msra.mxu0 %v1271
        %2196 = vmatprep.subr.mxu0 0.0
        %2197 = vmatpush1.msra.mxu0 %v1276
        %2198 = vmatprep.subr.mxu0 0.0
        %2199 = vmatpush1.msra.mxu0 %v1281
        %2200 = vmatprep.subr.mxu0 0.0
        %2201 = vmatpush1.msra.mxu0 %v1286
        %2202 = vmatprep.subr.mxu0 0.0
        %2203 = vmatpush1.msra.mxu0 %v1291
        %2204 = vmatprep.subr.mxu0 0.0
        %2205 = vmatpush1.msra.mxu0 %v1296
        %2206 = vmatprep.subr.mxu0 0.0
        %2207 = vmatpush1.msra.mxu0 %v1301
        %2208 = vmatprep.subr.mxu0 0.0
        %2209 = vmatpush1.msra.mxu0 %v1306
        %2210 = vmatprep.subr.mxu0 0.0
        %2211 = vmatpush1.msra.mxu0 %v1311
        %2212 = vmatprep.subr.mxu0 0.0
        %2213 = vmatpush1.msra.mxu0 %v1316
        %2214 = vmatprep.subr.mxu0 0.0
        %2215 = vmatpush1.msra.mxu0 %v1321
        %2216 = vmatprep.subr.mxu0 0.0
        %2217 = vmatpush1.msra.mxu0 %v1326
        %2218 = vmatprep.subr.mxu0 0.0
        %2219 = vmatpush1.msra.mxu0 %v1331
        %2220 = vmatprep.subr.mxu0 0.0
        %2221 = vmatpush1.msra.mxu0 %v1336
        %2222 = vmatprep.mubr.f32.mxu0 %v1812
        %2223 = vmatmul.mubr.f32.gmra.mrb[0].mxu0 %v1810
        %v2224 = vpop.f32.mrb[0].mxu0
        %v2225 = vadd.f32 %v2080, %v2224
        %v2226 = vpop.f32.mrb[0].mxu0
        %2227 = vmatprep.mubr.f32.mxu0 %v1820
        %2228 = vmatmul.mubr.f32.gmra.mrb[0].mxu0 %v1818
        %v2229 = vpop.f32.mrb[0].mxu0
        %v2230 = vadd.f32 %v2085, %v2229
        %v2231 = vpop.f32.mrb[0].mxu0
        %2232 = vmatprep.mubr.f32.mxu0 %v1828
        %2233 = vmatmul.mubr.f32.gmra.mrb[0].mxu0 %v1826
        %v2234 = vpop.f32.mrb[0].mxu0
        %v2235 = vadd.f32 %v2090, %v2234
        %v2236 = vpop.f32.mrb[0].mxu0
        %2237 = vmatprep.mubr.f32.mxu0 %v1836
        %2238 = vmatmul.mubr.f32.gmra.mrb[0].mxu0 %v1834
        %v2239 = vpop.f32.mrb[0].mxu0
        %v2240 = vadd.f32 %v2095, %v2239
        %v2241 = vpop.f32.mrb[0].mxu0
        %2242 = vmatprep.mubr.f32.mxu0 %v1844
        %2243 = vmatmul.mubr.f32.gmra.mrb[0].mxu0 %v1842
        %v2244 = vpop.f32.mrb[0].mxu0
        %v2245 = vadd.f32 %v2100, %v2244
        %v2246 = vpop.f32.mrb[0].mxu0
        %2247 = vmatprep.mubr.f32.mxu0 %v1852
        %2248 = vmatmul.mubr.f32.gmra.mrb[0].mxu0 %v1850
        %v2249 = vpop.f32.mrb[0].mxu0
        %v2250 = vadd.f32 %v2105, %v2249
        %v2251 = vpop.f32.mrb[0].mxu0
        %2252 = vmatprep.mubr.f32.mxu0 %v1860
        %2253 = vmatmul.mubr.f32.gmra.mrb[0].mxu0 %v1858
        %v2254 = vpop.f32.mrb[0].mxu0
        %v2255 = vadd.f32 %v2110, %v2254
        %v2256 = vpop.f32.mrb[0].mxu0
        %2257 = vmatprep.mubr.f32.mxu0 %v1868
        %2258 = vmatmul.mubr.f32.gmra.mrb[0].mxu0 %v1866
        %v2259 = vpop.f32.mrb[0].mxu0
        %v2260 = vadd.f32 %v2115, %v2259
        %v2261 = vpop.f32.mrb[0].mxu0
        %2262 = vmatprep.mubr.f32.mxu0 %v1876
        %2263 = vmatmul.mubr.f32.gmra.mrb[0].mxu0 %v1874
        %v2264 = vpop.f32.mrb[0].mxu0
        %v2265 = vadd.f32 %v2120, %v2264
        %v2266 = vpop.f32.mrb[0].mxu0
        %2267 = vmatprep.mubr.f32.mxu0 %v1884
        %2268 = vmatmul.mubr.f32.gmra.mrb[0].mxu0 %v1882
        %v2269 = vpop.f32.mrb[0].mxu0
        %v2270 = vadd.f32 %v2125, %v2269
        %v2271 = vpop.f32.mrb[0].mxu0
        %2272 = vmatprep.mubr.f32.mxu0 %v1892
        %2273 = vmatmul.mubr.f32.gmra.mrb[0].mxu0 %v1890
        %v2274 = vpop.f32.mrb[0].mxu0
        %v2275 = vadd.f32 %v2130, %v2274
        %v2276 = vpop.f32.mrb[0].mxu0
        %2277 = vmatprep.mubr.f32.mxu0 %v1900
        %2278 = vmatmul.mubr.f32.gmra.mrb[0].mxu0 %v1898
        %v2279 = vpop.f32.mrb[0].mxu0
        %v2280 = vadd.f32 %v2135, %v2279
        %v2281 = vpop.f32.mrb[0].mxu0
        %2282 = vmatprep.mubr.f32.mxu0 %v1908
        %2283 = vmatmul.mubr.f32.gmra.mrb[0].mxu0 %v1906
        %v2284 = vpop.f32.mrb[0].mxu0
        %v2285 = vadd.f32 %v2140, %v2284
        %v2286 = vpop.f32.mrb[0].mxu0
        %2287 = vmatprep.mubr.f32.mxu0 %v1916
        %2288 = vmatmul.mubr.f32.gmra.mrb[0].mxu0 %v1914
        %v2289 = vpop.f32.mrb[0].mxu0
        %v2290 = vadd.f32 %v2145, %v2289
        %v2291 = vpop.f32.mrb[0].mxu0
        %2292 = vmatprep.mubr.f32.mxu0 %v1924
        %2293 = vmatmul.mubr.f32.gmra.mrb[0].mxu0 %v1922
        %v2294 = vpop.f32.mrb[0].mxu0
        %v2295 = vadd.f32 %v2150, %v2294
        %v2296 = vpop.f32.mrb[0].mxu0
        %2297 = vmatprep.mubr.f32.mxu0 %v1932
        %2298 = vmatmul.mubr.f32.gmra.mrb[0].mxu0 %v1930
        %v2299 = vpop.f32.mrb[0].mxu0
        %v2300 = vadd.f32 %v2155, %v2299
        %v2301 = vpop.f32.mrb[0].mxu0
        %2302 = vdwg.mxu0
        %v2303 = vrcp.pop %v1937
        %v2304 = vmul.f32 %v2225, %v2303
        %v2305 = vrcp.pop %v1942
        %v2306 = vmul.f32 %v2230, %v2305
        %v2307 = vrcp.pop %v1947
        %v2308 = vmul.f32 %v2235, %v2307
        %v2309 = vrcp.pop %v1952
        %v2310 = vmul.f32 %v2240, %v2309
        %v2311 = vrcp.pop %v1957
        %v2312 = vmul.f32 %v2245, %v2311
        %v2313 = vrcp.pop %v1962
        %v2314 = vmul.f32 %v2250, %v2313
        %v2315 = vrcp.pop %v1967
        %v2316 = vmul.f32 %v2255, %v2315
        %v2317 = vrcp.pop %v1972
        %v2318 = vmul.f32 %v2260, %v2317
        %v2319 = vrcp.pop %v1977
        %v2320 = vmul.f32 %v2265, %v2319
        %v2321 = vrcp.pop %v1982
        %v2322 = vmul.f32 %v2270, %v2321
        %v2323 = vrcp.pop %v1987
        %v2324 = vmul.f32 %v2275, %v2323
        %v2325 = vrcp.pop %v1992
        %v2326 = vmul.f32 %v2280, %v2325
        %v2327 = vrcp.pop %v1997
        %v2328 = vmul.f32 %v2285, %v2327
        %v2329 = vrcp.pop %v2002
        %v2330 = vmul.f32 %v2290, %v2329
        %v2331 = vrcp.pop %v2007
        %v2332 = vmul.f32 %v2295, %v2331
        %v2333 = vrcp.pop %v2012
        %v2334 = vmul.f32 %v2300, %v2333
        %2335 = vst [vmem:[%s275] sm:$0xff] %v2304
        %2336 = vst [vmem:[%s275 + $0x8] sm:$0xff] %v2306
        %2337 = vst [vmem:[%s275 + $0x10] sm:$0xff] %v2308
        %2338 = vst [vmem:[%s275 + $0x18] sm:$0xff] %v2310
        %2339 = vst [vmem:[%s275 + $0x20] sm:$0xff] %v2312
        %2340 = vst [vmem:[%s275 + $0x28] sm:$0xff] %v2314
        %2341 = vst [vmem:[%s275 + $0x30] sm:$0xff] %v2316
        %2342 = vst [vmem:[%s275 + $0x38] sm:$0xff] %v2318
        %2343 = vst [vmem:[%s275 + $0x40] sm:$0xff] %v2320
        %2344 = vst [vmem:[%s275 + $0x48] sm:$0xff] %v2322
        %2345 = vst [vmem:[%s275 + $0x50] sm:$0xff] %v2324
        %2346 = vst [vmem:[%s275 + $0x58] sm:$0xff] %v2326
        %2347 = vst [vmem:[%s275 + $0x60] sm:$0xff] %v2328
        %2348 = vst [vmem:[%s275 + $0x68] sm:$0xff] %v2330
        %2349 = vst [vmem:[%s275 + $0x70] sm:$0xff] %v2332
        %2350 = vst [vmem:[%s275 + $0x78] sm:$0xff] %v2334
        %s2351 = sand.u32 %s135, 1
        %s2352 = scalar_lea.sflag [#allocation4], %s2351
        %s2353 = sand.u32 %s135, 1
        %s2354 = smul.addr %s2353, 128
        %s2355 = scalar_lea.vmem [#allocation11], %s2354
        // Predicated region
        $region61: #{tpu_custom_call.1} parent=39 // pred_check
          %p2356 = pneg %p145
        $region62: #{tpu_custom_call.1} parent=39 // pred_check_branch
          %2358 = sbr.rel (%p2356) target = $region64
        $region63: #{tpu_custom_call.1} parent=39 // pred_region
          %s2359 = smul.u32 16, %s22
          %s2361 = ssub.s32 2048, 2048
          %2362 = vsyncadd %s2352, %s2361
          %s2363 = smul.addr %s2359, 128
          %s2364 = scalar_lea.hbm %s5, %s2363
          %s2365 = sshll.u32 %s2355, 4
          %s2366 = int_to_ptr.vmem [resolvable:$true] %s2365
          %2371 = dma.vmem_to_hbm [thread:$0]  %s2366, 2048, %s2364, %s2352, 128, 128, 8
        $region64: #{tpu_custom_call.1} parent=39 // pred_fallthru
          _
      $region40: #{tpu_custom_call.1} parent=5 // pred_fallthru
        _
      %p2372 = scmp.le.s32.totalorder 2, %s17
      // Predicated region
      $region65: #{tpu_custom_call.1} parent=5 // pred_check
        %p2373 = pneg %p2372
      $region66: #{tpu_custom_call.1} parent=5 // pred_check_branch
        %2375 = sbr.rel (%p2373) target = $region68
      $region67: #{tpu_custom_call.1} parent=5 // pred_region
        %s2376 = ssub.s32 %s17, 2
        // Predicated region
        $region69: #{tpu_custom_call.1} parent=67 // pred_check
          %p2377 = pneg %p151
        $region70: #{tpu_custom_call.1} parent=67 // pred_check_branch
          %2379 = sbr.rel (%p2377) target = $region72
        $region71: #{tpu_custom_call.1} parent=67 // pred_region
          %s2380 = sand.u32 %s136, 1
          %s2381 = scalar_lea.sflag [#allocation4], %s2380
          %s2382 = sand.u32 %s136, 1
          %s2383 = smul.addr %s2382, 128
          %s2384 = scalar_lea.vmem [#allocation11], %s2383
          %2385 = dma.done %s2381, 2048
        $region72: #{tpu_custom_call.1} parent=67 // pred_fallthru
          _
      $region68: #{tpu_custom_call.1} parent=5 // pred_fallthru
        _
    $region6: #{tpu_custom_call.1} parent=1 // loop_footer
      %s21 = sadd.s32 1, %s17
    $region7: #{tpu_custom_call.1} parent=1 // loop_footer_branch
      %16 = sbr.rel target = $region3
    $region8: #{tpu_custom_call.1} parent=1 // loop_exit
      _
    %2386 = vsyncpa [#allocation3], 1
    %s2387 = scalar_lea.sflag [#allocation3], 1
    %2388 = vsyncpa %s2387, 1
    %2389 = vsyncpa [#allocation6], 1
    %2390 = vsyncpa [#allocation9], 1
    %2391 = vsyncpa [#allocation4], 1
    %s2392 = scalar_lea.sflag [#allocation4], 1
    %2393 = vsyncpa %s2392, 1

</llo_original>
